<compile_context>
chip_gen: v6e
topology: v6e:2x2x1
jax: 0.10.0
libtpu: 0.0.40
codegen_flags: <defaults>
</compile_context>

<pallas_src>
import functools

import jax
import jax.numpy as jnp
from jax import lax
from jax.experimental import pallas as pl
from jax.experimental.pallas import tpu as pltpu


def _ode_block_kernel(m_ref, x_ref, b_ref, o_ref, *, n_steps):
    """Integrate one D-tile: z_{k+1} = M @ z_k + b, k = 0..n_steps-1."""
    m = m_ref[...]                       # [N, N]   per-step RK4 operator
    b = b_ref[...]                       # [N, TD]  per-step forcing
    z0 = x_ref[...].astype(jnp.float32)  # [N, TD]  initial state tile

    def step(_, z):
        return jnp.dot(m, z, preferred_element_type=jnp.float32) + b

    # Static trip count; each unrolled step is one matmul + one add, so the
    # scheduler sees the whole (inherently serial) chain without spilling.
    z_final = lax.fori_loop(0, n_steps, step, z0, unroll=True)
    o_ref[...] = z_final.astype(o_ref.dtype)


def _pick_tile_d(d):
    """Feature-column tile width.

    Full D when it is small or not lane-dense (block == full dim is always
    legal); otherwise lane-dense (multiple of 128) tiles aiming for ~2 grid
    blocks so both v7x TensorCores are fed, capped at 512 columns.
    """
    if d <= 128 or d % 128 != 0:
        return d
    half = (d // 2) // 128 * 128
    tile = max(128, min(512, half))
    while d % tile != 0:
        tile -= 128
    return tile


def ode_block_forward(adj, x, alpha, x0, *, n_steps=20):
    """ODEblockW.forward: z = odeint(odefunc, x, [0, 1])[1].

    adj:   [N, N] dense weighted adjacency (row-normalized).
    x:     [N, D] input node features (initial state).
    alpha: [N, 1] sigmoid(alpha_train), per-node scalar.
    x0:    [N, D] odefunc.x0 (set_x0 copies x, so x0 == x).
    """
    n, d = x.shape
    dt = jnp.float32(1.0 / n_steps)

    # --- One-time algebraic fold (XLA, tiny matmuls) ------------------------
    #   A' = diag(alpha) @ (A - I)
    #   P  = dt*I + dt^2/2*A' + dt^3/6*A'^2 + dt^4/24*A'^3
    #   M  = I + P @ A'        (exact RK4 per-step operator)
    #   b  = P @ x0            (exact RK4 per-step forcing)
    eye = jnp.eye(n, dtype=jnp.float32)
    a1 = (alpha * (adj - eye)).astype(jnp.float32)
    a2 = jnp.dot(a1, a1, preferred_element_type=jnp.float32)
    a3 = jnp.dot(a2, a1, preferred_element_type=jnp.float32)
    p = (dt * eye
         + (dt ** 2 / 2.0) * a1
         + (dt ** 3 / 6.0) * a2
         + (dt ** 4 / 24.0) * a3)
    m_op = eye + jnp.dot(p, a1, preferred_element_type=jnp.float32)
    b_op = jnp.dot(p, x0.astype(jnp.float32),
                   preferred_element_type=jnp.float32)

    # --- Tiling: M resident per grid point, z/b/out tiled along D -----------
    tile_d = _pick_tile_d(d)
    grid = (d // tile_d,)

    cost = pl.CostEstimate(
        flops=2 * n_steps * n * n * d,
        transcendentals=0,
        bytes_accessed=4 * (n * n + 3 * n * d),
    )

    kernel = functools.partial(_ode_block_kernel, n_steps=n_steps)
    return pl.pallas_call(
        kernel,
        out_shape=jax.ShapeDtypeStruct((n, d), x.dtype),
        grid=grid,
        in_specs=[
            pl.BlockSpec((n, n), lambda j: (0, 0)),        # M (same block each tile)
            pl.BlockSpec((n, tile_d), lambda j: (0, j)),   # x tile
            pl.BlockSpec((n, tile_d), lambda j: (0, j)),   # b tile
        ],
        out_specs=pl.BlockSpec((n, tile_d), lambda j: (0, j)),
        compiler_params=pltpu.CompilerParams(
            dimension_semantics=("parallel",),
        ),
        cost_estimate=cost,
    )(m_op, x, b_op)


def _reference_forward(adj, x, alpha, x0, *, n_steps=20):
    """Pure-JAX reference: same fixed-step RK4, UNfolded odefunc form."""
    dt = 1.0 / n_steps

    def f(z):
        return alpha * (adj @ z - z) + x0

    z = x
    for _ in range(n_steps):
        k1 = f(z)
        k2 = f(z + 0.5 * dt * k1)
        k3 = f(z + 0.5 * dt * k2)
        k4 = f(z + dt * k3)
        z = z + (dt / 6.0) * (k1 + 2.0 * k2 + 2.0 * k3 + k4)
    return z


if __name__ == "__main__":
    key = jax.random.PRNGKey(0)
    k_adj, k_x = jax.random.split(key)

    N, D = 64, 32  # small: 64 graph nodes, hidden dim 32

    # Deterministic "parameters" of the odefunc:
    #   dense weighted adjacency, row-normalized (non-negative weights)
    raw = jax.random.uniform(k_adj, (N, N), dtype=jnp.float32)
    adj = raw / jnp.sum(raw, axis=1, keepdims=True)
    #   alpha_train initialized to zeros -> sigmoid(0) = 0.5 per node
    alpha = jax.nn.sigmoid(jnp.zeros((N, 1), dtype=jnp.float32))

    # Input node features; set_x0(x) => x0 = x
    x = jax.random.normal(k_x, (N, D), dtype=jnp.float32)
    x0 = x

    z = ode_block_forward(adj, x, alpha, x0, n_steps=20)
    z = jax.block_until_ready(z)

    z_ref = _reference_forward(adj, x, alpha, x0, n_steps=20)
    assert z.shape == (N, D)
    assert jnp.allclose(z, z_ref, atol=1e-4, rtol=1e-4), "mismatch vs reference"

    print("KERNEL_OK")
</pallas_src>

<mosaic_0001>
module attributes {stable_mosaic.version = 11 : i64} {
  func.func @_ode_block_kernel(%arg0: i32, %arg1: memref<64x64xf32, #tpu.memory_space<vmem>>, %arg2: memref<64x32xf32, #tpu.memory_space<vmem>>, %arg3: memref<64x32xf32, #tpu.memory_space<vmem>>, %arg4: memref<64x32xf32, #tpu.memory_space<vmem>>) attributes {dimension_semantics = [#tpu.dimension_semantics<parallel>], iteration_bounds = array<i64: 1>, scalar_prefetch = 0 : i64, scratch_operands = 0 : i64, tpu.core_type = #tpu.core_type<tc>, window_params = [{pipeline_mode = #tpu.pipeline_mode<synchronous>, transform_indices = @transform_0, window_bounds = array<i64: 64, 64>}, {transform_indices = @transform_1, window_bounds = array<i64: 64, 32>}, {transform_indices = @transform_2, window_bounds = array<i64: 64, 32>}, {transform_indices = @transform_3, window_bounds = array<i64: 64, 32>}]} {
    %c0 = arith.constant 0 : index
    %c0_0 = arith.constant 0 : index
    %0 = vector.load %arg1[%c0, %c0_0] : memref<64x64xf32, #tpu.memory_space<vmem>>, vector<64x64xf32>
    %c0_1 = arith.constant 0 : index
    %c0_2 = arith.constant 0 : index
    %1 = vector.load %arg3[%c0_1, %c0_2] : memref<64x32xf32, #tpu.memory_space<vmem>>, vector<64x32xf32>
    %c0_3 = arith.constant 0 : index
    %c0_4 = arith.constant 0 : index
    %2 = vector.load %arg2[%c0_3, %c0_4] : memref<64x32xf32, #tpu.memory_space<vmem>>, vector<64x32xf32>
    %c0_i32 = arith.constant 0 : i32
    %cst = arith.constant dense<0.000000e+00> : vector<64x32xf32>
    %3 = tpu.matmul %0, %2, %cst {dimension_numbers = #tpu.dot_dimension_numbers<[1], [0], [0], [1], [0, 0, 1, 1], [], []>} : vector<64x64xf32>, vector<64x32xf32>, vector<64x32xf32> -> vector<64x32xf32>
    %4 = arith.addf %3, %1 : vector<64x32xf32>
    %c1_i32 = arith.constant 1 : i32
    %cst_5 = arith.constant dense<0.000000e+00> : vector<64x32xf32>
    %5 = tpu.matmul %0, %4, %cst_5 {dimension_numbers = #tpu.dot_dimension_numbers<[1], [0], [0], [1], [0, 0, 1, 1], [], []>} : vector<64x64xf32>, vector<64x32xf32>, vector<64x32xf32> -> vector<64x32xf32>
    %6 = arith.addf %5, %1 : vector<64x32xf32>
    %c2_i32 = arith.constant 2 : i32
    %cst_6 = arith.constant dense<0.000000e+00> : vector<64x32xf32>
    %7 = tpu.matmul %0, %6, %cst_6 {dimension_numbers = #tpu.dot_dimension_numbers<[1], [0], [0], [1], [0, 0, 1, 1], [], []>} : vector<64x64xf32>, vector<64x32xf32>, vector<64x32xf32> -> vector<64x32xf32>
    %8 = arith.addf %7, %1 : vector<64x32xf32>
    %c3_i32 = arith.constant 3 : i32
    %cst_7 = arith.constant dense<0.000000e+00> : vector<64x32xf32>
    %9 = tpu.matmul %0, %8, %cst_7 {dimension_numbers = #tpu.dot_dimension_numbers<[1], [0], [0], [1], [0, 0, 1, 1], [], []>} : vector<64x64xf32>, vector<64x32xf32>, vector<64x32xf32> -> vector<64x32xf32>
    %10 = arith.addf %9, %1 : vector<64x32xf32>
    %c4_i32 = arith.constant 4 : i32
    %cst_8 = arith.constant dense<0.000000e+00> : vector<64x32xf32>
    %11 = tpu.matmul %0, %10, %cst_8 {dimension_numbers = #tpu.dot_dimension_numbers<[1], [0], [0], [1], [0, 0, 1, 1], [], []>} : vector<64x64xf32>, vector<64x32xf32>, vector<64x32xf32> -> vector<64x32xf32>
    %12 = arith.addf %11, %1 : vector<64x32xf32>
    %c5_i32 = arith.constant 5 : i32
    %cst_9 = arith.constant dense<0.000000e+00> : vector<64x32xf32>
    %13 = tpu.matmul %0, %12, %cst_9 {dimension_numbers = #tpu.dot_dimension_numbers<[1], [0], [0], [1], [0, 0, 1, 1], [], []>} : vector<64x64xf32>, vector<64x32xf32>, vector<64x32xf32> -> vector<64x32xf32>
    %14 = arith.addf %13, %1 : vector<64x32xf32>
    %c6_i32 = arith.constant 6 : i32
    %cst_10 = arith.constant dense<0.000000e+00> : vector<64x32xf32>
    %15 = tpu.matmul %0, %14, %cst_10 {dimension_numbers = #tpu.dot_dimension_numbers<[1], [0], [0], [1], [0, 0, 1, 1], [], []>} : vector<64x64xf32>, vector<64x32xf32>, vector<64x32xf32> -> vector<64x32xf32>
    %16 = arith.addf %15, %1 : vector<64x32xf32>
    %c7_i32 = arith.constant 7 : i32
    %cst_11 = arith.constant dense<0.000000e+00> : vector<64x32xf32>
    %17 = tpu.matmul %0, %16, %cst_11 {dimension_numbers = #tpu.dot_dimension_numbers<[1], [0], [0], [1], [0, 0, 1, 1], [], []>} : vector<64x64xf32>, vector<64x32xf32>, vector<64x32xf32> -> vector<64x32xf32>
    %18 = arith.addf %17, %1 : vector<64x32xf32>
    %c8_i32 = arith.constant 8 : i32
    %cst_12 = arith.constant dense<0.000000e+00> : vector<64x32xf32>
    %19 = tpu.matmul %0, %18, %cst_12 {dimension_numbers = #tpu.dot_dimension_numbers<[1], [0], [0], [1], [0, 0, 1, 1], [], []>} : vector<64x64xf32>, vector<64x32xf32>, vector<64x32xf32> -> vector<64x32xf32>
    %20 = arith.addf %19, %1 : vector<64x32xf32>
    %c9_i32 = arith.constant 9 : i32
    %cst_13 = arith.constant dense<0.000000e+00> : vector<64x32xf32>
    %21 = tpu.matmul %0, %20, %cst_13 {dimension_numbers = #tpu.dot_dimension_numbers<[1], [0], [0], [1], [0, 0, 1, 1], [], []>} : vector<64x64xf32>, vector<64x32xf32>, vector<64x32xf32> -> vector<64x32xf32>
    %22 = arith.addf %21, %1 : vector<64x32xf32>
    %c10_i32 = arith.constant 10 : i32
    %cst_14 = arith.constant dense<0.000000e+00> : vector<64x32xf32>
    %23 = tpu.matmul %0, %22, %cst_14 {dimension_numbers = #tpu.dot_dimension_numbers<[1], [0], [0], [1], [0, 0, 1, 1], [], []>} : vector<64x64xf32>, vector<64x32xf32>, vector<64x32xf32> -> vector<64x32xf32>
    %24 = arith.addf %23, %1 : vector<64x32xf32>
    %c11_i32 = arith.constant 11 : i32
    %cst_15 = arith.constant dense<0.000000e+00> : vector<64x32xf32>
    %25 = tpu.matmul %0, %24, %cst_15 {dimension_numbers = #tpu.dot_dimension_numbers<[1], [0], [0], [1], [0, 0, 1, 1], [], []>} : vector<64x64xf32>, vector<64x32xf32>, vector<64x32xf32> -> vector<64x32xf32>
    %26 = arith.addf %25, %1 : vector<64x32xf32>
    %c12_i32 = arith.constant 12 : i32
    %cst_16 = arith.constant dense<0.000000e+00> : vector<64x32xf32>
    %27 = tpu.matmul %0, %26, %cst_16 {dimension_numbers = #tpu.dot_dimension_numbers<[1], [0], [0], [1], [0, 0, 1, 1], [], []>} : vector<64x64xf32>, vector<64x32xf32>, vector<64x32xf32> -> vector<64x32xf32>
    %28 = arith.addf %27, %1 : vector<64x32xf32>
    %c13_i32 = arith.constant 13 : i32
    %cst_17 = arith.constant dense<0.000000e+00> : vector<64x32xf32>
    %29 = tpu.matmul %0, %28, %cst_17 {dimension_numbers = #tpu.dot_dimension_numbers<[1], [0], [0], [1], [0, 0, 1, 1], [], []>} : vector<64x64xf32>, vector<64x32xf32>, vector<64x32xf32> -> vector<64x32xf32>
    %30 = arith.addf %29, %1 : vector<64x32xf32>
    %c14_i32 = arith.constant 14 : i32
    %cst_18 = arith.constant dense<0.000000e+00> : vector<64x32xf32>
    %31 = tpu.matmul %0, %30, %cst_18 {dimension_numbers = #tpu.dot_dimension_numbers<[1], [0], [0], [1], [0, 0, 1, 1], [], []>} : vector<64x64xf32>, vector<64x32xf32>, vector<64x32xf32> -> vector<64x32xf32>
    %32 = arith.addf %31, %1 : vector<64x32xf32>
    %c15_i32 = arith.constant 15 : i32
    %cst_19 = arith.constant dense<0.000000e+00> : vector<64x32xf32>
    %33 = tpu.matmul %0, %32, %cst_19 {dimension_numbers = #tpu.dot_dimension_numbers<[1], [0], [0], [1], [0, 0, 1, 1], [], []>} : vector<64x64xf32>, vector<64x32xf32>, vector<64x32xf32> -> vector<64x32xf32>
    %34 = arith.addf %33, %1 : vector<64x32xf32>
    %c16_i32 = arith.constant 16 : i32
    %cst_20 = arith.constant dense<0.000000e+00> : vector<64x32xf32>
    %35 = tpu.matmul %0, %34, %cst_20 {dimension_numbers = #tpu.dot_dimension_numbers<[1], [0], [0], [1], [0, 0, 1, 1], [], []>} : vector<64x64xf32>, vector<64x32xf32>, vector<64x32xf32> -> vector<64x32xf32>
    %36 = arith.addf %35, %1 : vector<64x32xf32>
    %c17_i32 = arith.constant 17 : i32
    %cst_21 = arith.constant dense<0.000000e+00> : vector<64x32xf32>
    %37 = tpu.matmul %0, %36, %cst_21 {dimension_numbers = #tpu.dot_dimension_numbers<[1], [0], [0], [1], [0, 0, 1, 1], [], []>} : vector<64x64xf32>, vector<64x32xf32>, vector<64x32xf32> -> vector<64x32xf32>
    %38 = arith.addf %37, %1 : vector<64x32xf32>
    %c18_i32 = arith.constant 18 : i32
    %cst_22 = arith.constant dense<0.000000e+00> : vector<64x32xf32>
    %39 = tpu.matmul %0, %38, %cst_22 {dimension_numbers = #tpu.dot_dimension_numbers<[1], [0], [0], [1], [0, 0, 1, 1], [], []>} : vector<64x64xf32>, vector<64x32xf32>, vector<64x32xf32> -> vector<64x32xf32>
    %40 = arith.addf %39, %1 : vector<64x32xf32>
    %c19_i32 = arith.constant 19 : i32
    %cst_23 = arith.constant dense<0.000000e+00> : vector<64x32xf32>
    %41 = tpu.matmul %0, %40, %cst_23 {dimension_numbers = #tpu.dot_dimension_numbers<[1], [0], [0], [1], [0, 0, 1, 1], [], []>} : vector<64x64xf32>, vector<64x32xf32>, vector<64x32xf32> -> vector<64x32xf32>
    %42 = arith.addf %41, %1 : vector<64x32xf32>
    %c0_24 = arith.constant 0 : index
    %c0_25 = arith.constant 0 : index
    %43 = vector.load %arg4[%c0_24, %c0_25] : memref<64x32xf32, #tpu.memory_space<vmem>>, vector<64x32xf32>
    tpu.vector_store %arg4[%c0_24, %c0_25], %42 {strides = array<i32>} : memref<64x32xf32, #tpu.memory_space<vmem>>, vector<64x32xf32>,
    return
  }
  func.func @transform_0(%arg0: i32) -> (i32, i32) {
    %c0_i32 = arith.constant 0 : i32
    %c0_i32_0 = arith.constant 0 : i32
    %c0_i32_1 = arith.constant 0 : i32
    return %c0_i32, %c0_i32_0 : i32, i32
  }
  func.func @transform_1(%arg0: i32) -> (i32, i32) {
    %c0_i32 = arith.constant 0 : i32
    %c0_i32_0 = arith.constant 0 : i32
    return %c0_i32, %arg0 : i32, i32
  }
  func.func @transform_2(%arg0: i32) -> (i32, i32) {
    %c0_i32 = arith.constant 0 : i32
    %c0_i32_0 = arith.constant 0 : i32
    return %c0_i32, %arg0 : i32, i32
  }
  func.func @transform_3(%arg0: i32) -> (i32, i32) {
    %c0_i32 = arith.constant 0 : i32
    %c0_i32_0 = arith.constant 0 : i32
    return %c0_i32, %arg0 : i32, i32
  }
}

</mosaic_0001>

<llo_original>
// kernel: tpu_custom_call.1
$region0: #{tpu_custom_call.1}
  #allocation0 [shape = 'u32[]', space=smem, size = 0x4, offset = 0x4, fixed_abs, tag = 'smem constant byte address 0x4 - core index']
  #allocation1 [shape = 'u32[144,128]{1,0:T(1,128)}', space=vmem, size = 0x12000, scoped, tag = 'internal scratch']
  %s0 = inlined_call_operand.vmem [shape: f32[64,64], index: 0, kind: input, shape index: {}]
  %s1 = inlined_call_operand.vmem [shape: f32[64,32], index: 1, kind: input, shape index: {}]
  %s2 = inlined_call_operand.vmem [shape: f32[64,32], index: 2, kind: input, shape index: {}]
  %s3 = inlined_call_operand.vmem [shape: f32[64,32], index: 3, kind: output, shape index: {}]
  %s4 = sld [smem:[#allocation0]]
  $region22: #{tpu_custom_call.1} parent=0
    _
  %s6 = ssub.s32 1, %s4
  %s7 = scalar_select 0, %s6, %s4
  // Predicated region
  $region2: #{tpu_custom_call.1} parent=0 // pred_check
    _
  $region3: #{tpu_custom_call.1} parent=0 // pred_check_branch
    %9 = sbr.rel (0) target = $region5
  $region4: #{tpu_custom_call.1} parent=0 // pred_region
    _
  $region5: #{tpu_custom_call.1} parent=0 // pred_fallthru
    _
  // Predicated region
  $region6: #{tpu_custom_call.1} parent=0 // pred_check
    _
  $region7: #{tpu_custom_call.1} parent=0 // pred_check_branch
    %11 = sbr.rel (0) target = $region9
  $region8: #{tpu_custom_call.1} parent=0 // pred_region
    _
  $region9: #{tpu_custom_call.1} parent=0 // pred_fallthru
    _
  // Predicated region
  $region10: #{tpu_custom_call.1} parent=0 // pred_check
    _
  $region11: #{tpu_custom_call.1} parent=0 // pred_check_branch
    %13 = sbr.rel (0) target = $region13
  $region12: #{tpu_custom_call.1} parent=0 // pred_region
    _
  $region13: #{tpu_custom_call.1} parent=0 // pred_fallthru
    _
  %v14 = vld [vmem:[%s0] sm:$0xff]
  %v15 = vld [vmem:[%s0 + $0x8] sm:$0xff]
  %v16 = vld [vmem:[%s0 + $0x10] sm:$0xff]
  %v17 = vld [vmem:[%s0 + $0x18] sm:$0xff]
  %v18 = vld [vmem:[%s0 + $0x20] sm:$0xff]
  %v19 = vld [vmem:[%s0 + $0x28] sm:$0xff]
  %v20 = vld [vmem:[%s0 + $0x30] sm:$0xff]
  %v21 = vld [vmem:[%s0 + $0x38] sm:$0xff]
  %v22 = vld [vmem:[%s2] sm:$0xff]
  %v23 = vld [vmem:[%s2 + $0x8] sm:$0xff]
  %v24 = vld [vmem:[%s2 + $0x10] sm:$0xff]
  %v25 = vld [vmem:[%s2 + $0x18] sm:$0xff]
  %v26 = vld [vmem:[%s2 + $0x20] sm:$0xff]
  %v27 = vld [vmem:[%s2 + $0x28] sm:$0xff]
  %v28 = vld [vmem:[%s2 + $0x30] sm:$0xff]
  %v29 = vld [vmem:[%s2 + $0x38] sm:$0xff]
  %v30 = vld [vmem:[%s1] sm:$0xff]
  %v31 = vld [vmem:[%s1 + $0x8] sm:$0xff]
  %v32 = vld [vmem:[%s1 + $0x10] sm:$0xff]
  %v33 = vld [vmem:[%s1 + $0x18] sm:$0xff]
  %v34 = vld [vmem:[%s1 + $0x20] sm:$0xff]
  %v35 = vld [vmem:[%s1 + $0x28] sm:$0xff]
  %v36 = vld [vmem:[%s1 + $0x30] sm:$0xff]
  %v37 = vld [vmem:[%s1 + $0x38] sm:$0xff]
  %vm38 = vcmask 523264
  %v40 = vsel %vm38, %v14, 0
  %v43 = vsel %vm38, %v15, 0
  %v46 = vsel %vm38, %v16, 0
  %v49 = vsel %vm38, %v17, 0
  %v52 = vsel %vm38, %v18, 0
  %v55 = vsel %vm38, %v19, 0
  %v58 = vsel %vm38, %v20, 0
  %v61 = vsel %vm38, %v21, 0
  %63 = vmatprep.subr.mxu0 0.0
  %64 = vmatpush1.msra.mxu0 0.0
  %65 = vmatprep.subr.mxu0 0.0
  %66 = vmatpush1.msra.mxu0 0.0
  %67 = vmatprep.subr.mxu0 0.0
  %68 = vmatpush1.msra.mxu0 0.0
  %69 = vmatprep.subr.mxu0 0.0
  %70 = vmatpush1.msra.mxu0 0.0
  %71 = vmatprep.subr.mxu0 0.0
  %72 = vmatpush1.msra.mxu0 0.0
  %73 = vmatprep.subr.mxu0 0.0
  %74 = vmatpush1.msra.mxu0 0.0
  %75 = vmatprep.subr.mxu0 0.0
  %76 = vmatpush1.msra.mxu0 0.0
  %77 = vmatprep.subr.mxu0 0.0
  %78 = vmatpush1.msra.mxu0 0.0
  %79 = vmatprep.subr.mxu0 0.0
  %80 = vmatpush1.msra.mxu0 %v37
  %81 = vmatprep.subr.mxu0 0.0
  %82 = vmatpush1.msra.mxu0 %v36
  %83 = vmatprep.subr.mxu0 0.0
  %84 = vmatpush1.msra.mxu0 %v35
  %85 = vmatprep.subr.mxu0 0.0
  %86 = vmatpush1.msra.mxu0 %v34
  %87 = vmatprep.subr.mxu0 0.0
  %88 = vmatpush1.msra.mxu0 %v33
  %89 = vmatprep.subr.mxu0 0.0
  %90 = vmatpush1.msra.mxu0 %v32
  %91 = vmatprep.subr.mxu0 0.0
  %92 = vmatpush1.msra.mxu0 %v31
  %93 = vmatprep.subr.mxu0 0.0
  %94 = vmatpush1.msra.mxu0 %v30
  %95 = vmatprep.subr.mxu0 0.0
  %96 = vmatpush2.msra.mxu0 0.0
  %97 = vmatprep.subr.mxu0 0.0
  %98 = vmatpush2.msra.mxu0 0.0
  %99 = vmatprep.subr.mxu0 0.0
  %100 = vmatpush2.msra.mxu0 0.0
  %101 = vmatprep.subr.mxu0 0.0
  %102 = vmatpush2.msra.mxu0 0.0
  %103 = vmatprep.subr.mxu0 0.0
  %104 = vmatpush2.msra.mxu0 0.0
  %105 = vmatprep.subr.mxu0 0.0
  %106 = vmatpush2.msra.mxu0 0.0
  %107 = vmatprep.subr.mxu0 0.0
  %108 = vmatpush2.msra.mxu0 0.0
  %109 = vmatprep.subr.mxu0 0.0
  %110 = vmatpush2.msra.mxu0 0.0
  %111 = vmatprep.subr.mxu0 0.0
  %112 = vmatpush2.msra.mxu0 0.0
  %113 = vmatprep.subr.mxu0 0.0
  %114 = vmatpush2.msra.mxu0 0.0
  %115 = vmatprep.subr.mxu0 0.0
  %116 = vmatpush2.msra.mxu0 0.0
  %117 = vmatprep.subr.mxu0 0.0
  %118 = vmatpush2.msra.mxu0 0.0
  %119 = vmatprep.subr.mxu0 0.0
  %120 = vmatpush2.msra.mxu0 0.0
  %121 = vmatprep.subr.mxu0 0.0
  %122 = vmatpush2.msra.mxu0 0.0
  %123 = vmatprep.subr.mxu0 0.0
  %124 = vmatpush2.msra.mxu0 0.0
  %125 = vmatprep.subr.mxu0 0.0
  %126 = vmatpush2.msra.mxu0 0.0
  %127 = vmatprep.mubr.f32.mxu0 0.0
  %128 = vmatmul.mubr.f32.gmra.mxu0 %v40
  %v129 = vpop.f32.mrf.mxu0
  %v130 = vadd.f32 %v22, %v129
  %v131 = vpop.f32.mrf.mxu0
  %132 = vmatprep.mubr.f32.mxu0 0.0
  %133 = vmatmul.mubr.f32.gmra.mxu0 %v43
  %v134 = vpop.f32.mrf.mxu0
  %v135 = vadd.f32 %v23, %v134
  %v136 = vpop.f32.mrf.mxu0
  %137 = vmatprep.mubr.f32.mxu0 0.0
  %138 = vmatmul.mubr.f32.gmra.mxu0 %v46
  %v139 = vpop.f32.mrf.mxu0
  %v140 = vadd.f32 %v24, %v139
  %v141 = vpop.f32.mrf.mxu0
  %142 = vmatprep.mubr.f32.mxu0 0.0
  %143 = vmatmul.mubr.f32.gmra.mxu0 %v49
  %v144 = vpop.f32.mrf.mxu0
  %v145 = vadd.f32 %v25, %v144
  %v146 = vpop.f32.mrf.mxu0
  %147 = vmatprep.mubr.f32.mxu0 0.0
  %148 = vmatmul.mubr.f32.gmra.mxu0 %v52
  %v149 = vpop.f32.mrf.mxu0
  %v150 = vadd.f32 %v26, %v149
  %v151 = vpop.f32.mrf.mxu0
  %152 = vmatprep.mubr.f32.mxu0 0.0
  %153 = vmatmul.mubr.f32.gmra.mxu0 %v55
  %v154 = vpop.f32.mrf.mxu0
  %v155 = vadd.f32 %v27, %v154
  %v156 = vpop.f32.mrf.mxu0
  %157 = vmatprep.mubr.f32.mxu0 0.0
  %158 = vmatmul.mubr.f32.gmra.mxu0 %v58
  %v159 = vpop.f32.mrf.mxu0
  %v160 = vadd.f32 %v28, %v159
  %v161 = vpop.f32.mrf.mxu0
  %162 = vmatprep.mubr.f32.mxu0 0.0
  %163 = vmatmul.mubr.f32.gmra.mxu0 %v61
  %v164 = vpop.f32.mrf.mxu0
  %v165 = vadd.f32 %v29, %v164
  %v166 = vpop.f32.mrf.mxu0
  %167 = vdwg.mxu0
  %168 = vmatprep.subr.mxu0 0.0
  %169 = vmatpush1.msra.mxu0 0.0
  %170 = vmatprep.subr.mxu0 0.0
  %171 = vmatpush1.msra.mxu0 0.0
  %172 = vmatprep.subr.mxu0 0.0
  %173 = vmatpush1.msra.mxu0 0.0
  %174 = vmatprep.subr.mxu0 0.0
  %175 = vmatpush1.msra.mxu0 0.0
  %176 = vmatprep.subr.mxu0 0.0
  %177 = vmatpush1.msra.mxu0 0.0
  %178 = vmatprep.subr.mxu0 0.0
  %179 = vmatpush1.msra.mxu0 0.0
  %180 = vmatprep.subr.mxu0 0.0
  %181 = vmatpush1.msra.mxu0 0.0
  %182 = vmatprep.subr.mxu0 0.0
  %183 = vmatpush1.msra.mxu0 0.0
  %184 = vmatprep.subr.mxu0 0.0
  %185 = vmatpush1.msra.mxu0 %v165
  %186 = vmatprep.subr.mxu0 0.0
  %187 = vmatpush1.msra.mxu0 %v160
  %188 = vmatprep.subr.mxu0 0.0
  %189 = vmatpush1.msra.mxu0 %v155
  %190 = vmatprep.subr.mxu0 0.0
  %191 = vmatpush1.msra.mxu0 %v150
  %192 = vmatprep.subr.mxu0 0.0
  %193 = vmatpush1.msra.mxu0 %v145
  %194 = vmatprep.subr.mxu0 0.0
  %195 = vmatpush1.msra.mxu0 %v140
  %196 = vmatprep.subr.mxu0 0.0
  %197 = vmatpush1.msra.mxu0 %v135
  %198 = vmatprep.subr.mxu0 0.0
  %199 = vmatpush1.msra.mxu0 %v130
  %200 = vmatprep.subr.mxu0 0.0
  %201 = vmatpush2.msra.mxu0 0.0
  %202 = vmatprep.subr.mxu0 0.0
  %203 = vmatpush2.msra.mxu0 0.0
  %204 = vmatprep.subr.mxu0 0.0
  %205 = vmatpush2.msra.mxu0 0.0
  %206 = vmatprep.subr.mxu0 0.0
  %207 = vmatpush2.msra.mxu0 0.0
  %208 = vmatprep.subr.mxu0 0.0
  %209 = vmatpush2.msra.mxu0 0.0
  %210 = vmatprep.subr.mxu0 0.0
  %211 = vmatpush2.msra.mxu0 0.0
  %212 = vmatprep.subr.mxu0 0.0
  %213 = vmatpush2.msra.mxu0 0.0
  %214 = vmatprep.subr.mxu0 0.0
  %215 = vmatpush2.msra.mxu0 0.0
  %216 = vmatprep.subr.mxu0 0.0
  %217 = vmatpush2.msra.mxu0 0.0
  %218 = vmatprep.subr.mxu0 0.0
  %219 = vmatpush2.msra.mxu0 0.0
  %220 = vmatprep.subr.mxu0 0.0
  %221 = vmatpush2.msra.mxu0 0.0
  %222 = vmatprep.subr.mxu0 0.0
  %223 = vmatpush2.msra.mxu0 0.0
  %224 = vmatprep.subr.mxu0 0.0
  %225 = vmatpush2.msra.mxu0 0.0
  %226 = vmatprep.subr.mxu0 0.0
  %227 = vmatpush2.msra.mxu0 0.0
  %228 = vmatprep.subr.mxu0 0.0
  %229 = vmatpush2.msra.mxu0 0.0
  %230 = vmatprep.subr.mxu0 0.0
  %231 = vmatpush2.msra.mxu0 0.0
  %232 = vmatprep.mubr.f32.mxu0 0.0
  %233 = vmatmul.mubr.f32.gmra.mxu0 %v40
  %v234 = vpop.f32.mrf.mxu0
  %v235 = vadd.f32 %v22, %v234
  %v236 = vpop.f32.mrf.mxu0
  %237 = vmatprep.mubr.f32.mxu0 0.0
  %238 = vmatmul.mubr.f32.gmra.mxu0 %v43
  %v239 = vpop.f32.mrf.mxu0
  %v240 = vadd.f32 %v23, %v239
  %v241 = vpop.f32.mrf.mxu0
  %242 = vmatprep.mubr.f32.mxu0 0.0
  %243 = vmatmul.mubr.f32.gmra.mxu0 %v46
  %v244 = vpop.f32.mrf.mxu0
  %v245 = vadd.f32 %v24, %v244
  %v246 = vpop.f32.mrf.mxu0
  %247 = vmatprep.mubr.f32.mxu0 0.0
  %248 = vmatmul.mubr.f32.gmra.mxu0 %v49
  %v249 = vpop.f32.mrf.mxu0
  %v250 = vadd.f32 %v25, %v249
  %v251 = vpop.f32.mrf.mxu0
  %252 = vmatprep.mubr.f32.mxu0 0.0
  %253 = vmatmul.mubr.f32.gmra.mxu0 %v52
  %v254 = vpop.f32.mrf.mxu0
  %v255 = vadd.f32 %v26, %v254
  %v256 = vpop.f32.mrf.mxu0
  %257 = vmatprep.mubr.f32.mxu0 0.0
  %258 = vmatmul.mubr.f32.gmra.mxu0 %v55
  %v259 = vpop.f32.mrf.mxu0
  %v260 = vadd.f32 %v27, %v259
  %v261 = vpop.f32.mrf.mxu0
  %262 = vmatprep.mubr.f32.mxu0 0.0
  %263 = vmatmul.mubr.f32.gmra.mxu0 %v58
  %v264 = vpop.f32.mrf.mxu0
  %v265 = vadd.f32 %v28, %v264
  %v266 = vpop.f32.mrf.mxu0
  %267 = vmatprep.mubr.f32.mxu0 0.0
  %268 = vmatmul.mubr.f32.gmra.mxu0 %v61
  %v269 = vpop.f32.mrf.mxu0
  %v270 = vadd.f32 %v29, %v269
  %v271 = vpop.f32.mrf.mxu0
  %272 = vdwg.mxu0
  %273 = vmatprep.subr.mxu0 0.0
  %274 = vmatpush1.msra.mxu0 0.0
  %275 = vmatprep.subr.mxu0 0.0
  %276 = vmatpush1.msra.mxu0 0.0
  %277 = vmatprep.subr.mxu0 0.0
  %278 = vmatpush1.msra.mxu0 0.0
  %279 = vmatprep.subr.mxu0 0.0
  %280 = vmatpush1.msra.mxu0 0.0
  %281 = vmatprep.subr.mxu0 0.0
  %282 = vmatpush1.msra.mxu0 0.0
  %283 = vmatprep.subr.mxu0 0.0
  %284 = vmatpush1.msra.mxu0 0.0
  %285 = vmatprep.subr.mxu0 0.0
  %286 = vmatpush1.msra.mxu0 0.0
  %287 = vmatprep.subr.mxu0 0.0
  %288 = vmatpush1.msra.mxu0 0.0
  %289 = vmatprep.subr.mxu0 0.0
  %290 = vmatpush1.msra.mxu0 %v270
  %291 = vmatprep.subr.mxu0 0.0
  %292 = vmatpush1.msra.mxu0 %v265
  %293 = vmatprep.subr.mxu0 0.0
  %294 = vmatpush1.msra.mxu0 %v260
  %295 = vmatprep.subr.mxu0 0.0
  %296 = vmatpush1.msra.mxu0 %v255
  %297 = vmatprep.subr.mxu0 0.0
  %298 = vmatpush1.msra.mxu0 %v250
  %299 = vmatprep.subr.mxu0 0.0
  %300 = vmatpush1.msra.mxu0 %v245
  %301 = vmatprep.subr.mxu0 0.0
  %302 = vmatpush1.msra.mxu0 %v240
  %303 = vmatprep.subr.mxu0 0.0
  %304 = vmatpush1.msra.mxu0 %v235
  %305 = vmatprep.subr.mxu0 0.0
  %306 = vmatpush2.msra.mxu0 0.0
  %307 = vmatprep.subr.mxu0 0.0
  %308 = vmatpush2.msra.mxu0 0.0
  %309 = vmatprep.subr.mxu0 0.0
  %310 = vmatpush2.msra.mxu0 0.0
  %311 = vmatprep.subr.mxu0 0.0
  %312 = vmatpush2.msra.mxu0 0.0
  %313 = vmatprep.subr.mxu0 0.0
  %314 = vmatpush2.msra.mxu0 0.0
  %315 = vmatprep.subr.mxu0 0.0
  %316 = vmatpush2.msra.mxu0 0.0
  %317 = vmatprep.subr.mxu0 0.0
  %318 = vmatpush2.msra.mxu0 0.0
  %319 = vmatprep.subr.mxu0 0.0
  %320 = vmatpush2.msra.mxu0 0.0
  %321 = vmatprep.subr.mxu0 0.0
  %322 = vmatpush2.msra.mxu0 0.0
  %323 = vmatprep.subr.mxu0 0.0
  %324 = vmatpush2.msra.mxu0 0.0
  %325 = vmatprep.subr.mxu0 0.0
  %326 = vmatpush2.msra.mxu0 0.0
  %327 = vmatprep.subr.mxu0 0.0
  %328 = vmatpush2.msra.mxu0 0.0
  %329 = vmatprep.subr.mxu0 0.0
  %330 = vmatpush2.msra.mxu0 0.0
  %331 = vmatprep.subr.mxu0 0.0
  %332 = vmatpush2.msra.mxu0 0.0
  %333 = vmatprep.subr.mxu0 0.0
  %334 = vmatpush2.msra.mxu0 0.0
  %335 = vmatprep.subr.mxu0 0.0
  %336 = vmatpush2.msra.mxu0 0.0
  %337 = vmatprep.mubr.f32.mxu0 0.0
  %338 = vmatmul.mubr.f32.gmra.mxu0 %v40
  %v339 = vpop.f32.mrf.mxu0
  %v340 = vadd.f32 %v22, %v339
  %v341 = vpop.f32.mrf.mxu0
  %342 = vmatprep.mubr.f32.mxu0 0.0
  %343 = vmatmul.mubr.f32.gmra.mxu0 %v43
  %v344 = vpop.f32.mrf.mxu0
  %v345 = vadd.f32 %v23, %v344
  %v346 = vpop.f32.mrf.mxu0
  %347 = vmatprep.mubr.f32.mxu0 0.0
  %348 = vmatmul.mubr.f32.gmra.mxu0 %v46
  %v349 = vpop.f32.mrf.mxu0
  %v350 = vadd.f32 %v24, %v349
  %v351 = vpop.f32.mrf.mxu0
  %352 = vmatprep.mubr.f32.mxu0 0.0
  %353 = vmatmul.mubr.f32.gmra.mxu0 %v49
  %v354 = vpop.f32.mrf.mxu0
  %v355 = vadd.f32 %v25, %v354
  %v356 = vpop.f32.mrf.mxu0
  %357 = vmatprep.mubr.f32.mxu0 0.0
  %358 = vmatmul.mubr.f32.gmra.mxu0 %v52
  %v359 = vpop.f32.mrf.mxu0
  %v360 = vadd.f32 %v26, %v359
  %v361 = vpop.f32.mrf.mxu0
  %362 = vmatprep.mubr.f32.mxu0 0.0
  %363 = vmatmul.mubr.f32.gmra.mxu0 %v55
  %v364 = vpop.f32.mrf.mxu0
  %v365 = vadd.f32 %v27, %v364
  %v366 = vpop.f32.mrf.mxu0
  %367 = vmatprep.mubr.f32.mxu0 0.0
  %368 = vmatmul.mubr.f32.gmra.mxu0 %v58
  %v369 = vpop.f32.mrf.mxu0
  %v370 = vadd.f32 %v28, %v369
  %v371 = vpop.f32.mrf.mxu0
  %372 = vmatprep.mubr.f32.mxu0 0.0
  %373 = vmatmul.mubr.f32.gmra.mxu0 %v61
  %v374 = vpop.f32.mrf.mxu0
  %v375 = vadd.f32 %v29, %v374
  %v376 = vpop.f32.mrf.mxu0
  %377 = vdwg.mxu0
  %378 = vmatprep.subr.mxu0 0.0
  %379 = vmatpush1.msra.mxu0 0.0
  %380 = vmatprep.subr.mxu0 0.0
  %381 = vmatpush1.msra.mxu0 0.0
  %382 = vmatprep.subr.mxu0 0.0
  %383 = vmatpush1.msra.mxu0 0.0
  %384 = vmatprep.subr.mxu0 0.0
  %385 = vmatpush1.msra.mxu0 0.0
  %386 = vmatprep.subr.mxu0 0.0
  %387 = vmatpush1.msra.mxu0 0.0
  %388 = vmatprep.subr.mxu0 0.0
  %389 = vmatpush1.msra.mxu0 0.0
  %390 = vmatprep.subr.mxu0 0.0
  %391 = vmatpush1.msra.mxu0 0.0
  %392 = vmatprep.subr.mxu0 0.0
  %393 = vmatpush1.msra.mxu0 0.0
  %394 = vmatprep.subr.mxu0 0.0
  %395 = vmatpush1.msra.mxu0 %v375
  %396 = vmatprep.subr.mxu0 0.0
  %397 = vmatpush1.msra.mxu0 %v370
  %398 = vmatprep.subr.mxu0 0.0
  %399 = vmatpush1.msra.mxu0 %v365
  %400 = vmatprep.subr.mxu0 0.0
  %401 = vmatpush1.msra.mxu0 %v360
  %402 = vmatprep.subr.mxu0 0.0
  %403 = vmatpush1.msra.mxu0 %v355
  %404 = vmatprep.subr.mxu0 0.0
  %405 = vmatpush1.msra.mxu0 %v350
  %406 = vmatprep.subr.mxu0 0.0
  %407 = vmatpush1.msra.mxu0 %v345
  %408 = vmatprep.subr.mxu0 0.0
  %409 = vmatpush1.msra.mxu0 %v340
  %410 = vmatprep.subr.mxu0 0.0
  %411 = vmatpush2.msra.mxu0 0.0
  %412 = vmatprep.subr.mxu0 0.0
  %413 = vmatpush2.msra.mxu0 0.0
  %414 = vmatprep.subr.mxu0 0.0
  %415 = vmatpush2.msra.mxu0 0.0
  %416 = vmatprep.subr.mxu0 0.0
  %417 = vmatpush2.msra.mxu0 0.0
  %418 = vmatprep.subr.mxu0 0.0
  %419 = vmatpush2.msra.mxu0 0.0
  %420 = vmatprep.subr.mxu0 0.0
  %421 = vmatpush2.msra.mxu0 0.0
  %422 = vmatprep.subr.mxu0 0.0
  %423 = vmatpush2.msra.mxu0 0.0
  %424 = vmatprep.subr.mxu0 0.0
  %425 = vmatpush2.msra.mxu0 0.0
  %426 = vmatprep.subr.mxu0 0.0
  %427 = vmatpush2.msra.mxu0 0.0
  %428 = vmatprep.subr.mxu0 0.0
  %429 = vmatpush2.msra.mxu0 0.0
  %430 = vmatprep.subr.mxu0 0.0
  %431 = vmatpush2.msra.mxu0 0.0
  %432 = vmatprep.subr.mxu0 0.0
  %433 = vmatpush2.msra.mxu0 0.0
  %434 = vmatprep.subr.mxu0 0.0
  %435 = vmatpush2.msra.mxu0 0.0
  %436 = vmatprep.subr.mxu0 0.0
  %437 = vmatpush2.msra.mxu0 0.0
  %438 = vmatprep.subr.mxu0 0.0
  %439 = vmatpush2.msra.mxu0 0.0
  %440 = vmatprep.subr.mxu0 0.0
  %441 = vmatpush2.msra.mxu0 0.0
  %442 = vmatprep.mubr.f32.mxu0 0.0
  %443 = vmatmul.mubr.f32.gmra.mxu0 %v40
  %v444 = vpop.f32.mrf.mxu0
  %v445 = vadd.f32 %v22, %v444
  %v446 = vpop.f32.mrf.mxu0
  %447 = vmatprep.mubr.f32.mxu0 0.0
  %448 = vmatmul.mubr.f32.gmra.mxu0 %v43
  %v449 = vpop.f32.mrf.mxu0
  %v450 = vadd.f32 %v23, %v449
  %v451 = vpop.f32.mrf.mxu0
  %452 = vmatprep.mubr.f32.mxu0 0.0
  %453 = vmatmul.mubr.f32.gmra.mxu0 %v46
  %v454 = vpop.f32.mrf.mxu0
  %v455 = vadd.f32 %v24, %v454
  %v456 = vpop.f32.mrf.mxu0
  %457 = vmatprep.mubr.f32.mxu0 0.0
  %458 = vmatmul.mubr.f32.gmra.mxu0 %v49
  %v459 = vpop.f32.mrf.mxu0
  %v460 = vadd.f32 %v25, %v459
  %v461 = vpop.f32.mrf.mxu0
  %462 = vmatprep.mubr.f32.mxu0 0.0
  %463 = vmatmul.mubr.f32.gmra.mxu0 %v52
  %v464 = vpop.f32.mrf.mxu0
  %v465 = vadd.f32 %v26, %v464
  %v466 = vpop.f32.mrf.mxu0
  %467 = vmatprep.mubr.f32.mxu0 0.0
  %468 = vmatmul.mubr.f32.gmra.mxu0 %v55
  %v469 = vpop.f32.mrf.mxu0
  %v470 = vadd.f32 %v27, %v469
  %v471 = vpop.f32.mrf.mxu0
  %472 = vmatprep.mubr.f32.mxu0 0.0
  %473 = vmatmul.mubr.f32.gmra.mxu0 %v58
  %v474 = vpop.f32.mrf.mxu0
  %v475 = vadd.f32 %v28, %v474
  %v476 = vpop.f32.mrf.mxu0
  %477 = vmatprep.mubr.f32.mxu0 0.0
  %478 = vmatmul.mubr.f32.gmra.mxu0 %v61
  %v479 = vpop.f32.mrf.mxu0
  %v480 = vadd.f32 %v29, %v479
  %v481 = vpop.f32.mrf.mxu0
  %482 = vdwg.mxu0
  %483 = vmatprep.subr.mxu0 0.0
  %484 = vmatpush1.msra.mxu0 0.0
  %485 = vmatprep.subr.mxu0 0.0
  %486 = vmatpush1.msra.mxu0 0.0
  %487 = vmatprep.subr.mxu0 0.0
  %488 = vmatpush1.msra.mxu0 0.0
  %489 = vmatprep.subr.mxu0 0.0
  %490 = vmatpush1.msra.mxu0 0.0
  %491 = vmatprep.subr.mxu0 0.0
  %492 = vmatpush1.msra.mxu0 0.0
  %493 = vmatprep.subr.mxu0 0.0
  %494 = vmatpush1.msra.mxu0 0.0
  %495 = vmatprep.subr.mxu0 0.0
  %496 = vmatpush1.msra.mxu0 0.0
  %497 = vmatprep.subr.mxu0 0.0
  %498 = vmatpush1.msra.mxu0 0.0
  %499 = vmatprep.subr.mxu0 0.0
  %500 = vmatpush1.msra.mxu0 %v480
  %501 = vmatprep.subr.mxu0 0.0
  %502 = vmatpush1.msra.mxu0 %v475
  %503 = vmatprep.subr.mxu0 0.0
  %504 = vmatpush1.msra.mxu0 %v470
  %505 = vmatprep.subr.mxu0 0.0
  %506 = vmatpush1.msra.mxu0 %v465
  %507 = vmatprep.subr.mxu0 0.0
  %508 = vmatpush1.msra.mxu0 %v460
  %509 = vmatprep.subr.mxu0 0.0
  %510 = vmatpush1.msra.mxu0 %v455
  %511 = vmatprep.subr.mxu0 0.0
  %512 = vmatpush1.msra.mxu0 %v450
  %513 = vmatprep.subr.mxu0 0.0
  %514 = vmatpush1.msra.mxu0 %v445
  %515 = vmatprep.subr.mxu0 0.0
  %516 = vmatpush2.msra.mxu0 0.0
  %517 = vmatprep.subr.mxu0 0.0
  %518 = vmatpush2.msra.mxu0 0.0
  %519 = vmatprep.subr.mxu0 0.0
  %520 = vmatpush2.msra.mxu0 0.0
  %521 = vmatprep.subr.mxu0 0.0
  %522 = vmatpush2.msra.mxu0 0.0
  %523 = vmatprep.subr.mxu0 0.0
  %524 = vmatpush2.msra.mxu0 0.0
  %525 = vmatprep.subr.mxu0 0.0
  %526 = vmatpush2.msra.mxu0 0.0
  %527 = vmatprep.subr.mxu0 0.0
  %528 = vmatpush2.msra.mxu0 0.0
  %529 = vmatprep.subr.mxu0 0.0
  %530 = vmatpush2.msra.mxu0 0.0
  %531 = vmatprep.subr.mxu0 0.0
  %532 = vmatpush2.msra.mxu0 0.0
  %533 = vmatprep.subr.mxu0 0.0
  %534 = vmatpush2.msra.mxu0 0.0
  %535 = vmatprep.subr.mxu0 0.0
  %536 = vmatpush2.msra.mxu0 0.0
  %537 = vmatprep.subr.mxu0 0.0
  %538 = vmatpush2.msra.mxu0 0.0
  %539 = vmatprep.subr.mxu0 0.0
  %540 = vmatpush2.msra.mxu0 0.0
  %541 = vmatprep.subr.mxu0 0.0
  %542 = vmatpush2.msra.mxu0 0.0
  %543 = vmatprep.subr.mxu0 0.0
  %544 = vmatpush2.msra.mxu0 0.0
  %545 = vmatprep.subr.mxu0 0.0
  %546 = vmatpush2.msra.mxu0 0.0
  %547 = vmatprep.mubr.f32.mxu0 0.0
  %548 = vmatmul.mubr.f32.gmra.mxu0 %v40
  %v549 = vpop.f32.mrf.mxu0
  %v550 = vadd.f32 %v22, %v549
  %v551 = vpop.f32.mrf.mxu0
  %552 = vmatprep.mubr.f32.mxu0 0.0
  %553 = vmatmul.mubr.f32.gmra.mxu0 %v43
  %v554 = vpop.f32.mrf.mxu0
  %v555 = vadd.f32 %v23, %v554
  %v556 = vpop.f32.mrf.mxu0
  %557 = vmatprep.mubr.f32.mxu0 0.0
  %558 = vmatmul.mubr.f32.gmra.mxu0 %v46
  %v559 = vpop.f32.mrf.mxu0
  %v560 = vadd.f32 %v24, %v559
  %v561 = vpop.f32.mrf.mxu0
  %562 = vmatprep.mubr.f32.mxu0 0.0
  %563 = vmatmul.mubr.f32.gmra.mxu0 %v49
  %v564 = vpop.f32.mrf.mxu0
  %v565 = vadd.f32 %v25, %v564
  %v566 = vpop.f32.mrf.mxu0
  %567 = vmatprep.mubr.f32.mxu0 0.0
  %568 = vmatmul.mubr.f32.gmra.mxu0 %v52
  %v569 = vpop.f32.mrf.mxu0
  %v570 = vadd.f32 %v26, %v569
  %v571 = vpop.f32.mrf.mxu0
  %572 = vmatprep.mubr.f32.mxu0 0.0
  %573 = vmatmul.mubr.f32.gmra.mxu0 %v55
  %v574 = vpop.f32.mrf.mxu0
  %v575 = vadd.f32 %v27, %v574
  %v576 = vpop.f32.mrf.mxu0
  %577 = vmatprep.mubr.f32.mxu0 0.0
  %578 = vmatmul.mubr.f32.gmra.mxu0 %v58
  %v579 = vpop.f32.mrf.mxu0
  %v580 = vadd.f32 %v28, %v579
  %v581 = vpop.f32.mrf.mxu0
  %582 = vmatprep.mubr.f32.mxu0 0.0
  %583 = vmatmul.mubr.f32.gmra.mxu0 %v61
  %v584 = vpop.f32.mrf.mxu0
  %v585 = vadd.f32 %v29, %v584
  %v586 = vpop.f32.mrf.mxu0
  %587 = vdwg.mxu0
  %588 = vmatprep.subr.mxu0 0.0
  %589 = vmatpush1.msra.mxu0 0.0
  %590 = vmatprep.subr.mxu0 0.0
  %591 = vmatpush1.msra.mxu0 0.0
  %592 = vmatprep.subr.mxu0 0.0
  %593 = vmatpush1.msra.mxu0 0.0
  %594 = vmatprep.subr.mxu0 0.0
  %595 = vmatpush1.msra.mxu0 0.0
  %596 = vmatprep.subr.mxu0 0.0
  %597 = vmatpush1.msra.mxu0 0.0
  %598 = vmatprep.subr.mxu0 0.0
  %599 = vmatpush1.msra.mxu0 0.0
  %600 = vmatprep.subr.mxu0 0.0
  %601 = vmatpush1.msra.mxu0 0.0
  %602 = vmatprep.subr.mxu0 0.0
  %603 = vmatpush1.msra.mxu0 0.0
  %604 = vmatprep.subr.mxu0 0.0
  %605 = vmatpush1.msra.mxu0 %v585
  %606 = vmatprep.subr.mxu0 0.0
  %607 = vmatpush1.msra.mxu0 %v580
  %608 = vmatprep.subr.mxu0 0.0
  %609 = vmatpush1.msra.mxu0 %v575
  %610 = vmatprep.subr.mxu0 0.0
  %611 = vmatpush1.msra.mxu0 %v570
  %612 = vmatprep.subr.mxu0 0.0
  %613 = vmatpush1.msra.mxu0 %v565
  %614 = vmatprep.subr.mxu0 0.0
  %615 = vmatpush1.msra.mxu0 %v560
  %616 = vmatprep.subr.mxu0 0.0
  %617 = vmatpush1.msra.mxu0 %v555
  %618 = vmatprep.subr.mxu0 0.0
  %619 = vmatpush1.msra.mxu0 %v550
  %620 = vmatprep.subr.mxu0 0.0
  %621 = vmatpush2.msra.mxu0 0.0
  %622 = vmatprep.subr.mxu0 0.0
  %623 = vmatpush2.msra.mxu0 0.0
  %624 = vmatprep.subr.mxu0 0.0
  %625 = vmatpush2.msra.mxu0 0.0
  %626 = vmatprep.subr.mxu0 0.0
  %627 = vmatpush2.msra.mxu0 0.0
  %628 = vmatprep.subr.mxu0 0.0
  %629 = vmatpush2.msra.mxu0 0.0
  %630 = vmatprep.subr.mxu0 0.0
  %631 = vmatpush2.msra.mxu0 0.0
  %632 = vmatprep.subr.mxu0 0.0
  %633 = vmatpush2.msra.mxu0 0.0
  %634 = vmatprep.subr.mxu0 0.0
  %635 = vmatpush2.msra.mxu0 0.0
  %636 = vmatprep.subr.mxu0 0.0
  %637 = vmatpush2.msra.mxu0 0.0
  %638 = vmatprep.subr.mxu0 0.0
  %639 = vmatpush2.msra.mxu0 0.0
  %640 = vmatprep.subr.mxu0 0.0
  %641 = vmatpush2.msra.mxu0 0.0
  %642 = vmatprep.subr.mxu0 0.0
  %643 = vmatpush2.msra.mxu0 0.0
  %644 = vmatprep.subr.mxu0 0.0
  %645 = vmatpush2.msra.mxu0 0.0
  %646 = vmatprep.subr.mxu0 0.0
  %647 = vmatpush2.msra.mxu0 0.0
  %648 = vmatprep.subr.mxu0 0.0
  %649 = vmatpush2.msra.mxu0 0.0
  %650 = vmatprep.subr.mxu0 0.0
  %651 = vmatpush2.msra.mxu0 0.0
  %652 = vmatprep.mubr.f32.mxu0 0.0
  %653 = vmatmul.mubr.f32.gmra.mxu0 %v40
  %v654 = vpop.f32.mrf.mxu0
  %v655 = vadd.f32 %v22, %v654
  %v656 = vpop.f32.mrf.mxu0
  %657 = vmatprep.mubr.f32.mxu0 0.0
  %658 = vmatmul.mubr.f32.gmra.mxu0 %v43
  %v659 = vpop.f32.mrf.mxu0
  %v660 = vadd.f32 %v23, %v659
  %v661 = vpop.f32.mrf.mxu0
  %662 = vmatprep.mubr.f32.mxu0 0.0
  %663 = vmatmul.mubr.f32.gmra.mxu0 %v46
  %v664 = vpop.f32.mrf.mxu0
  %v665 = vadd.f32 %v24, %v664
  %v666 = vpop.f32.mrf.mxu0
  %667 = vmatprep.mubr.f32.mxu0 0.0
  %668 = vmatmul.mubr.f32.gmra.mxu0 %v49
  %v669 = vpop.f32.mrf.mxu0
  %v670 = vadd.f32 %v25, %v669
  %v671 = vpop.f32.mrf.mxu0
  %672 = vmatprep.mubr.f32.mxu0 0.0
  %673 = vmatmul.mubr.f32.gmra.mxu0 %v52
  %v674 = vpop.f32.mrf.mxu0
  %v675 = vadd.f32 %v26, %v674
  %v676 = vpop.f32.mrf.mxu0
  %677 = vmatprep.mubr.f32.mxu0 0.0
  %678 = vmatmul.mubr.f32.gmra.mxu0 %v55
  %v679 = vpop.f32.mrf.mxu0
  %v680 = vadd.f32 %v27, %v679
  %v681 = vpop.f32.mrf.mxu0
  %682 = vmatprep.mubr.f32.mxu0 0.0
  %683 = vmatmul.mubr.f32.gmra.mxu0 %v58
  %v684 = vpop.f32.mrf.mxu0
  %v685 = vadd.f32 %v28, %v684
  %v686 = vpop.f32.mrf.mxu0
  %687 = vmatprep.mubr.f32.mxu0 0.0
  %688 = vmatmul.mubr.f32.gmra.mxu0 %v61
  %v689 = vpop.f32.mrf.mxu0
  %v690 = vadd.f32 %v29, %v689
  %v691 = vpop.f32.mrf.mxu0
  %692 = vdwg.mxu0
  %693 = vmatprep.subr.mxu0 0.0
  %694 = vmatpush1.msra.mxu0 0.0
  %695 = vmatprep.subr.mxu0 0.0
  %696 = vmatpush1.msra.mxu0 0.0
  %697 = vmatprep.subr.mxu0 0.0
  %698 = vmatpush1.msra.mxu0 0.0
  %699 = vmatprep.subr.mxu0 0.0
  %700 = vmatpush1.msra.mxu0 0.0
  %701 = vmatprep.subr.mxu0 0.0
  %702 = vmatpush1.msra.mxu0 0.0
  %703 = vmatprep.subr.mxu0 0.0
  %704 = vmatpush1.msra.mxu0 0.0
  %705 = vmatprep.subr.mxu0 0.0
  %706 = vmatpush1.msra.mxu0 0.0
  %707 = vmatprep.subr.mxu0 0.0
  %708 = vmatpush1.msra.mxu0 0.0
  %709 = vmatprep.subr.mxu0 0.0
  %710 = vmatpush1.msra.mxu0 %v690
  %711 = vmatprep.subr.mxu0 0.0
  %712 = vmatpush1.msra.mxu0 %v685
  %713 = vmatprep.subr.mxu0 0.0
  %714 = vmatpush1.msra.mxu0 %v680
  %715 = vmatprep.subr.mxu0 0.0
  %716 = vmatpush1.msra.mxu0 %v675
  %717 = vmatprep.subr.mxu0 0.0
  %718 = vmatpush1.msra.mxu0 %v670
  %719 = vmatprep.subr.mxu0 0.0
  %720 = vmatpush1.msra.mxu0 %v665
  %721 = vmatprep.subr.mxu0 0.0
  %722 = vmatpush1.msra.mxu0 %v660
  %723 = vmatprep.subr.mxu0 0.0
  %724 = vmatpush1.msra.mxu0 %v655
  %725 = vmatprep.subr.mxu0 0.0
  %726 = vmatpush2.msra.mxu0 0.0
  %727 = vmatprep.subr.mxu0 0.0
  %728 = vmatpush2.msra.mxu0 0.0
  %729 = vmatprep.subr.mxu0 0.0
  %730 = vmatpush2.msra.mxu0 0.0
  %731 = vmatprep.subr.mxu0 0.0
  %732 = vmatpush2.msra.mxu0 0.0
  %733 = vmatprep.subr.mxu0 0.0
  %734 = vmatpush2.msra.mxu0 0.0
  %735 = vmatprep.subr.mxu0 0.0
  %736 = vmatpush2.msra.mxu0 0.0
  %737 = vmatprep.subr.mxu0 0.0
  %738 = vmatpush2.msra.mxu0 0.0
  %739 = vmatprep.subr.mxu0 0.0
  %740 = vmatpush2.msra.mxu0 0.0
  %741 = vmatprep.subr.mxu0 0.0
  %742 = vmatpush2.msra.mxu0 0.0
  %743 = vmatprep.subr.mxu0 0.0
  %744 = vmatpush2.msra.mxu0 0.0
  %745 = vmatprep.subr.mxu0 0.0
  %746 = vmatpush2.msra.mxu0 0.0
  %747 = vmatprep.subr.mxu0 0.0
  %748 = vmatpush2.msra.mxu0 0.0
  %749 = vmatprep.subr.mxu0 0.0
  %750 = vmatpush2.msra.mxu0 0.0
  %751 = vmatprep.subr.mxu0 0.0
  %752 = vmatpush2.msra.mxu0 0.0
  %753 = vmatprep.subr.mxu0 0.0
  %754 = vmatpush2.msra.mxu0 0.0
  %755 = vmatprep.subr.mxu0 0.0
  %756 = vmatpush2.msra.mxu0 0.0
  %757 = vmatprep.mubr.f32.mxu0 0.0
  %758 = vmatmul.mubr.f32.gmra.mxu0 %v40
  %v759 = vpop.f32.mrf.mxu0
  %v760 = vadd.f32 %v22, %v759
  %v761 = vpop.f32.mrf.mxu0
  %762 = vmatprep.mubr.f32.mxu0 0.0
  %763 = vmatmul.mubr.f32.gmra.mxu0 %v43
  %v764 = vpop.f32.mrf.mxu0
  %v765 = vadd.f32 %v23, %v764
  %v766 = vpop.f32.mrf.mxu0
  %767 = vmatprep.mubr.f32.mxu0 0.0
  %768 = vmatmul.mubr.f32.gmra.mxu0 %v46
  %v769 = vpop.f32.mrf.mxu0
  %v770 = vadd.f32 %v24, %v769
  %v771 = vpop.f32.mrf.mxu0
  %772 = vmatprep.mubr.f32.mxu0 0.0
  %773 = vmatmul.mubr.f32.gmra.mxu0 %v49
  %v774 = vpop.f32.mrf.mxu0
  %v775 = vadd.f32 %v25, %v774
  %v776 = vpop.f32.mrf.mxu0
  %777 = vmatprep.mubr.f32.mxu0 0.0
  %778 = vmatmul.mubr.f32.gmra.mxu0 %v52
  %v779 = vpop.f32.mrf.mxu0
  %v780 = vadd.f32 %v26, %v779
  %v781 = vpop.f32.mrf.mxu0
  %782 = vmatprep.mubr.f32.mxu0 0.0
  %783 = vmatmul.mubr.f32.gmra.mxu0 %v55
  %v784 = vpop.f32.mrf.mxu0
  %v785 = vadd.f32 %v27, %v784
  %v786 = vpop.f32.mrf.mxu0
  %787 = vmatprep.mubr.f32.mxu0 0.0
  %788 = vmatmul.mubr.f32.gmra.mxu0 %v58
  %v789 = vpop.f32.mrf.mxu0
  %v790 = vadd.f32 %v28, %v789
  %v791 = vpop.f32.mrf.mxu0
  %792 = vmatprep.mubr.f32.mxu0 0.0
  %793 = vmatmul.mubr.f32.gmra.mxu0 %v61
  %v794 = vpop.f32.mrf.mxu0
  %v795 = vadd.f32 %v29, %v794
  %v796 = vpop.f32.mrf.mxu0
  %797 = vdwg.mxu0
  %798 = vmatprep.subr.mxu0 0.0
  %799 = vmatpush1.msra.mxu0 0.0
  %800 = vmatprep.subr.mxu0 0.0
  %801 = vmatpush1.msra.mxu0 0.0
  %802 = vmatprep.subr.mxu0 0.0
  %803 = vmatpush1.msra.mxu0 0.0
  %804 = vmatprep.subr.mxu0 0.0
  %805 = vmatpush1.msra.mxu0 0.0
  %806 = vmatprep.subr.mxu0 0.0
  %807 = vmatpush1.msra.mxu0 0.0
  %808 = vmatprep.subr.mxu0 0.0
  %809 = vmatpush1.msra.mxu0 0.0
  %810 = vmatprep.subr.mxu0 0.0
  %811 = vmatpush1.msra.mxu0 0.0
  %812 = vmatprep.subr.mxu0 0.0
  %813 = vmatpush1.msra.mxu0 0.0
  %814 = vmatprep.subr.mxu0 0.0
  %815 = vmatpush1.msra.mxu0 %v795
  %816 = vmatprep.subr.mxu0 0.0
  %817 = vmatpush1.msra.mxu0 %v790
  %818 = vmatprep.subr.mxu0 0.0
  %819 = vmatpush1.msra.mxu0 %v785
  %820 = vmatprep.subr.mxu0 0.0
  %821 = vmatpush1.msra.mxu0 %v780
  %822 = vmatprep.subr.mxu0 0.0
  %823 = vmatpush1.msra.mxu0 %v775
  %824 = vmatprep.subr.mxu0 0.0
  %825 = vmatpush1.msra.mxu0 %v770
  %826 = vmatprep.subr.mxu0 0.0
  %827 = vmatpush1.msra.mxu0 %v765
  %828 = vmatprep.subr.mxu0 0.0
  %829 = vmatpush1.msra.mxu0 %v760
  %830 = vmatprep.subr.mxu0 0.0
  %831 = vmatpush2.msra.mxu0 0.0
  %832 = vmatprep.subr.mxu0 0.0
  %833 = vmatpush2.msra.mxu0 0.0
  %834 = vmatprep.subr.mxu0 0.0
  %835 = vmatpush2.msra.mxu0 0.0
  %836 = vmatprep.subr.mxu0 0.0
  %837 = vmatpush2.msra.mxu0 0.0
  %838 = vmatprep.subr.mxu0 0.0
  %839 = vmatpush2.msra.mxu0 0.0
  %840 = vmatprep.subr.mxu0 0.0
  %841 = vmatpush2.msra.mxu0 0.0
  %842 = vmatprep.subr.mxu0 0.0
  %843 = vmatpush2.msra.mxu0 0.0
  %844 = vmatprep.subr.mxu0 0.0
  %845 = vmatpush2.msra.mxu0 0.0
  %846 = vmatprep.subr.mxu0 0.0
  %847 = vmatpush2.msra.mxu0 0.0
  %848 = vmatprep.subr.mxu0 0.0
  %849 = vmatpush2.msra.mxu0 0.0
  %850 = vmatprep.subr.mxu0 0.0
  %851 = vmatpush2.msra.mxu0 0.0
  %852 = vmatprep.subr.mxu0 0.0
  %853 = vmatpush2.msra.mxu0 0.0
  %854 = vmatprep.subr.mxu0 0.0
  %855 = vmatpush2.msra.mxu0 0.0
  %856 = vmatprep.subr.mxu0 0.0
  %857 = vmatpush2.msra.mxu0 0.0
  %858 = vmatprep.subr.mxu0 0.0
  %859 = vmatpush2.msra.mxu0 0.0
  %860 = vmatprep.subr.mxu0 0.0
  %861 = vmatpush2.msra.mxu0 0.0
  %862 = vmatprep.mubr.f32.mxu0 0.0
  %863 = vmatmul.mubr.f32.gmra.mxu0 %v40
  %v864 = vpop.f32.mrf.mxu0
  %v865 = vadd.f32 %v22, %v864
  %v866 = vpop.f32.mrf.mxu0
  %867 = vmatprep.mubr.f32.mxu0 0.0
  %868 = vmatmul.mubr.f32.gmra.mxu0 %v43
  %v869 = vpop.f32.mrf.mxu0
  %v870 = vadd.f32 %v23, %v869
  %v871 = vpop.f32.mrf.mxu0
  %872 = vmatprep.mubr.f32.mxu0 0.0
  %873 = vmatmul.mubr.f32.gmra.mxu0 %v46
  %v874 = vpop.f32.mrf.mxu0
  %v875 = vadd.f32 %v24, %v874
  %v876 = vpop.f32.mrf.mxu0
  %877 = vmatprep.mubr.f32.mxu0 0.0
  %878 = vmatmul.mubr.f32.gmra.mxu0 %v49
  %v879 = vpop.f32.mrf.mxu0
  %v880 = vadd.f32 %v25, %v879
  %v881 = vpop.f32.mrf.mxu0
  %882 = vmatprep.mubr.f32.mxu0 0.0
  %883 = vmatmul.mubr.f32.gmra.mxu0 %v52
  %v884 = vpop.f32.mrf.mxu0
  %v885 = vadd.f32 %v26, %v884
  %v886 = vpop.f32.mrf.mxu0
  %887 = vmatprep.mubr.f32.mxu0 0.0
  %888 = vmatmul.mubr.f32.gmra.mxu0 %v55
  %v889 = vpop.f32.mrf.mxu0
  %v890 = vadd.f32 %v27, %v889
  %v891 = vpop.f32.mrf.mxu0
  %892 = vmatprep.mubr.f32.mxu0 0.0
  %893 = vmatmul.mubr.f32.gmra.mxu0 %v58
  %v894 = vpop.f32.mrf.mxu0
  %v895 = vadd.f32 %v28, %v894
  %v896 = vpop.f32.mrf.mxu0
  %897 = vmatprep.mubr.f32.mxu0 0.0
  %898 = vmatmul.mubr.f32.gmra.mxu0 %v61
  %v899 = vpop.f32.mrf.mxu0
  %v900 = vadd.f32 %v29, %v899
  %v901 = vpop.f32.mrf.mxu0
  %902 = vdwg.mxu0
  %903 = vmatprep.subr.mxu0 0.0
  %904 = vmatpush1.msra.mxu0 0.0
  %905 = vmatprep.subr.mxu0 0.0
  %906 = vmatpush1.msra.mxu0 0.0
  %907 = vmatprep.subr.mxu0 0.0
  %908 = vmatpush1.msra.mxu0 0.0
  %909 = vmatprep.subr.mxu0 0.0
  %910 = vmatpush1.msra.mxu0 0.0
  %911 = vmatprep.subr.mxu0 0.0
  %912 = vmatpush1.msra.mxu0 0.0
  %913 = vmatprep.subr.mxu0 0.0
  %914 = vmatpush1.msra.mxu0 0.0
  %915 = vmatprep.subr.mxu0 0.0
  %916 = vmatpush1.msra.mxu0 0.0
  %917 = vmatprep.subr.mxu0 0.0
  %918 = vmatpush1.msra.mxu0 0.0
  %919 = vmatprep.subr.mxu0 0.0
  %920 = vmatpush1.msra.mxu0 %v900
  %921 = vmatprep.subr.mxu0 0.0
  %922 = vmatpush1.msra.mxu0 %v895
  %923 = vmatprep.subr.mxu0 0.0
  %924 = vmatpush1.msra.mxu0 %v890
  %925 = vmatprep.subr.mxu0 0.0
  %926 = vmatpush1.msra.mxu0 %v885
  %927 = vmatprep.subr.mxu0 0.0
  %928 = vmatpush1.msra.mxu0 %v880
  %929 = vmatprep.subr.mxu0 0.0
  %930 = vmatpush1.msra.mxu0 %v875
  %931 = vmatprep.subr.mxu0 0.0
  %932 = vmatpush1.msra.mxu0 %v870
  %933 = vmatprep.subr.mxu0 0.0
  %934 = vmatpush1.msra.mxu0 %v865
  %935 = vmatprep.subr.mxu0 0.0
  %936 = vmatpush2.msra.mxu0 0.0
  %937 = vmatprep.subr.mxu0 0.0
  %938 = vmatpush2.msra.mxu0 0.0
  %939 = vmatprep.subr.mxu0 0.0
  %940 = vmatpush2.msra.mxu0 0.0
  %941 = vmatprep.subr.mxu0 0.0
  %942 = vmatpush2.msra.mxu0 0.0
  %943 = vmatprep.subr.mxu0 0.0
  %944 = vmatpush2.msra.mxu0 0.0
  %945 = vmatprep.subr.mxu0 0.0
  %946 = vmatpush2.msra.mxu0 0.0
  %947 = vmatprep.subr.mxu0 0.0
  %948 = vmatpush2.msra.mxu0 0.0
  %949 = vmatprep.subr.mxu0 0.0
  %950 = vmatpush2.msra.mxu0 0.0
  %951 = vmatprep.subr.mxu0 0.0
  %952 = vmatpush2.msra.mxu0 0.0
  %953 = vmatprep.subr.mxu0 0.0
  %954 = vmatpush2.msra.mxu0 0.0
  %955 = vmatprep.subr.mxu0 0.0
  %956 = vmatpush2.msra.mxu0 0.0
  %957 = vmatprep.subr.mxu0 0.0
  %958 = vmatpush2.msra.mxu0 0.0
  %959 = vmatprep.subr.mxu0 0.0
  %960 = vmatpush2.msra.mxu0 0.0
  %961 = vmatprep.subr.mxu0 0.0
  %962 = vmatpush2.msra.mxu0 0.0
  %963 = vmatprep.subr.mxu0 0.0
  %964 = vmatpush2.msra.mxu0 0.0
  %965 = vmatprep.subr.mxu0 0.0
  %966 = vmatpush2.msra.mxu0 0.0
  %967 = vmatprep.mubr.f32.mxu0 0.0
  %968 = vmatmul.mubr.f32.gmra.mxu0 %v40
  %v969 = vpop.f32.mrf.mxu0
  %v970 = vadd.f32 %v22, %v969
  %v971 = vpop.f32.mrf.mxu0
  %972 = vmatprep.mubr.f32.mxu0 0.0
  %973 = vmatmul.mubr.f32.gmra.mxu0 %v43
  %v974 = vpop.f32.mrf.mxu0
  %v975 = vadd.f32 %v23, %v974
  %v976 = vpop.f32.mrf.mxu0
  %977 = vmatprep.mubr.f32.mxu0 0.0
  %978 = vmatmul.mubr.f32.gmra.mxu0 %v46
  %v979 = vpop.f32.mrf.mxu0
  %v980 = vadd.f32 %v24, %v979
  %v981 = vpop.f32.mrf.mxu0
  %982 = vmatprep.mubr.f32.mxu0 0.0
  %983 = vmatmul.mubr.f32.gmra.mxu0 %v49
  %v984 = vpop.f32.mrf.mxu0
  %v985 = vadd.f32 %v25, %v984
  %v986 = vpop.f32.mrf.mxu0
  %987 = vmatprep.mubr.f32.mxu0 0.0
  %988 = vmatmul.mubr.f32.gmra.mxu0 %v52
  %v989 = vpop.f32.mrf.mxu0
  %v990 = vadd.f32 %v26, %v989
  %v991 = vpop.f32.mrf.mxu0
  %992 = vmatprep.mubr.f32.mxu0 0.0
  %993 = vmatmul.mubr.f32.gmra.mxu0 %v55
  %v994 = vpop.f32.mrf.mxu0
  %v995 = vadd.f32 %v27, %v994
  %v996 = vpop.f32.mrf.mxu0
  %997 = vmatprep.mubr.f32.mxu0 0.0
  %998 = vmatmul.mubr.f32.gmra.mxu0 %v58
  %v999 = vpop.f32.mrf.mxu0
  %v1000 = vadd.f32 %v28, %v999
  %v1001 = vpop.f32.mrf.mxu0
  %1002 = vmatprep.mubr.f32.mxu0 0.0
  %1003 = vmatmul.mubr.f32.gmra.mxu0 %v61
  %v1004 = vpop.f32.mrf.mxu0
  %v1005 = vadd.f32 %v29, %v1004
  %v1006 = vpop.f32.mrf.mxu0
  %1007 = vdwg.mxu0
  %1008 = vmatprep.subr.mxu0 0.0
  %1009 = vmatpush1.msra.mxu0 0.0
  %1010 = vmatprep.subr.mxu0 0.0
  %1011 = vmatpush1.msra.mxu0 0.0
  %1012 = vmatprep.subr.mxu0 0.0
  %1013 = vmatpush1.msra.mxu0 0.0
  %1014 = vmatprep.subr.mxu0 0.0
  %1015 = vmatpush1.msra.mxu0 0.0
  %1016 = vmatprep.subr.mxu0 0.0
  %1017 = vmatpush1.msra.mxu0 0.0
  %1018 = vmatprep.subr.mxu0 0.0
  %1019 = vmatpush1.msra.mxu0 0.0
  %1020 = vmatprep.subr.mxu0 0.0
  %1021 = vmatpush1.msra.mxu0 0.0
  %1022 = vmatprep.subr.mxu0 0.0
  %1023 = vmatpush1.msra.mxu0 0.0
  %1024 = vmatprep.subr.mxu0 0.0
  %1025 = vmatpush1.msra.mxu0 %v1005
  %1026 = vmatprep.subr.mxu0 0.0
  %1027 = vmatpush1.msra.mxu0 %v1000
  %1028 = vmatprep.subr.mxu0 0.0
  %1029 = vmatpush1.msra.mxu0 %v995
  %1030 = vmatprep.subr.mxu0 0.0
  %1031 = vmatpush1.msra.mxu0 %v990
  %1032 = vmatprep.subr.mxu0 0.0
  %1033 = vmatpush1.msra.mxu0 %v985
  %1034 = vmatprep.subr.mxu0 0.0
  %1035 = vmatpush1.msra.mxu0 %v980
  %1036 = vmatprep.subr.mxu0 0.0
  %1037 = vmatpush1.msra.mxu0 %v975
  %1038 = vmatprep.subr.mxu0 0.0
  %1039 = vmatpush1.msra.mxu0 %v970
  %1040 = vmatprep.subr.mxu0 0.0
  %1041 = vmatpush2.msra.mxu0 0.0
  %1042 = vmatprep.subr.mxu0 0.0
  %1043 = vmatpush2.msra.mxu0 0.0
  %1044 = vmatprep.subr.mxu0 0.0
  %1045 = vmatpush2.msra.mxu0 0.0
  %1046 = vmatprep.subr.mxu0 0.0
  %1047 = vmatpush2.msra.mxu0 0.0
  %1048 = vmatprep.subr.mxu0 0.0
  %1049 = vmatpush2.msra.mxu0 0.0
  %1050 = vmatprep.subr.mxu0 0.0
  %1051 = vmatpush2.msra.mxu0 0.0
  %1052 = vmatprep.subr.mxu0 0.0
  %1053 = vmatpush2.msra.mxu0 0.0
  %1054 = vmatprep.subr.mxu0 0.0
  %1055 = vmatpush2.msra.mxu0 0.0
  %1056 = vmatprep.subr.mxu0 0.0
  %1057 = vmatpush2.msra.mxu0 0.0
  %1058 = vmatprep.subr.mxu0 0.0
  %1059 = vmatpush2.msra.mxu0 0.0
  %1060 = vmatprep.subr.mxu0 0.0
  %1061 = vmatpush2.msra.mxu0 0.0
  %1062 = vmatprep.subr.mxu0 0.0
  %1063 = vmatpush2.msra.mxu0 0.0
  %1064 = vmatprep.subr.mxu0 0.0
  %1065 = vmatpush2.msra.mxu0 0.0
  %1066 = vmatprep.subr.mxu0 0.0
  %1067 = vmatpush2.msra.mxu0 0.0
  %1068 = vmatprep.subr.mxu0 0.0
  %1069 = vmatpush2.msra.mxu0 0.0
  %1070 = vmatprep.subr.mxu0 0.0
  %1071 = vmatpush2.msra.mxu0 0.0
  %1072 = vmatprep.mubr.f32.mxu0 0.0
  %1073 = vmatmul.mubr.f32.gmra.mxu0 %v40
  %v1074 = vpop.f32.mrf.mxu0
  %v1075 = vadd.f32 %v22, %v1074
  %v1076 = vpop.f32.mrf.mxu0
  %1077 = vmatprep.mubr.f32.mxu0 0.0
  %1078 = vmatmul.mubr.f32.gmra.mxu0 %v43
  %v1079 = vpop.f32.mrf.mxu0
  %v1080 = vadd.f32 %v23, %v1079
  %v1081 = vpop.f32.mrf.mxu0
  %1082 = vmatprep.mubr.f32.mxu0 0.0
  %1083 = vmatmul.mubr.f32.gmra.mxu0 %v46
  %v1084 = vpop.f32.mrf.mxu0
  %v1085 = vadd.f32 %v24, %v1084
  %v1086 = vpop.f32.mrf.mxu0
  %1087 = vmatprep.mubr.f32.mxu0 0.0
  %1088 = vmatmul.mubr.f32.gmra.mxu0 %v49
  %v1089 = vpop.f32.mrf.mxu0
  %v1090 = vadd.f32 %v25, %v1089
  %v1091 = vpop.f32.mrf.mxu0
  %1092 = vmatprep.mubr.f32.mxu0 0.0
  %1093 = vmatmul.mubr.f32.gmra.mxu0 %v52
  %v1094 = vpop.f32.mrf.mxu0
  %v1095 = vadd.f32 %v26, %v1094
  %v1096 = vpop.f32.mrf.mxu0
  %1097 = vmatprep.mubr.f32.mxu0 0.0
  %1098 = vmatmul.mubr.f32.gmra.mxu0 %v55
  %v1099 = vpop.f32.mrf.mxu0
  %v1100 = vadd.f32 %v27, %v1099
  %v1101 = vpop.f32.mrf.mxu0
  %1102 = vmatprep.mubr.f32.mxu0 0.0
  %1103 = vmatmul.mubr.f32.gmra.mxu0 %v58
  %v1104 = vpop.f32.mrf.mxu0
  %v1105 = vadd.f32 %v28, %v1104
  %v1106 = vpop.f32.mrf.mxu0
  %1107 = vmatprep.mubr.f32.mxu0 0.0
  %1108 = vmatmul.mubr.f32.gmra.mxu0 %v61
  %v1109 = vpop.f32.mrf.mxu0
  %v1110 = vadd.f32 %v29, %v1109
  %v1111 = vpop.f32.mrf.mxu0
  %1112 = vdwg.mxu0
  %1113 = vmatprep.subr.mxu0 0.0
  %1114 = vmatpush1.msra.mxu0 0.0
  %1115 = vmatprep.subr.mxu0 0.0
  %1116 = vmatpush1.msra.mxu0 0.0
  %1117 = vmatprep.subr.mxu0 0.0
  %1118 = vmatpush1.msra.mxu0 0.0
  %1119 = vmatprep.subr.mxu0 0.0
  %1120 = vmatpush1.msra.mxu0 0.0
  %1121 = vmatprep.subr.mxu0 0.0
  %1122 = vmatpush1.msra.mxu0 0.0
  %1123 = vmatprep.subr.mxu0 0.0
  %1124 = vmatpush1.msra.mxu0 0.0
  %1125 = vmatprep.subr.mxu0 0.0
  %1126 = vmatpush1.msra.mxu0 0.0
  %1127 = vmatprep.subr.mxu0 0.0
  %1128 = vmatpush1.msra.mxu0 0.0
  %1129 = vmatprep.subr.mxu0 0.0
  %1130 = vmatpush1.msra.mxu0 %v1110
  %1131 = vmatprep.subr.mxu0 0.0
  %1132 = vmatpush1.msra.mxu0 %v1105
  %1133 = vmatprep.subr.mxu0 0.0
  %1134 = vmatpush1.msra.mxu0 %v1100
  %1135 = vmatprep.subr.mxu0 0.0
  %1136 = vmatpush1.msra.mxu0 %v1095
  %1137 = vmatprep.subr.mxu0 0.0
  %1138 = vmatpush1.msra.mxu0 %v1090
  %1139 = vmatprep.subr.mxu0 0.0
  %1140 = vmatpush1.msra.mxu0 %v1085
  %1141 = vmatprep.subr.mxu0 0.0
  %1142 = vmatpush1.msra.mxu0 %v1080
  %1143 = vmatprep.subr.mxu0 0.0
  %1144 = vmatpush1.msra.mxu0 %v1075
  %1145 = vmatprep.subr.mxu0 0.0
  %1146 = vmatpush2.msra.mxu0 0.0
  %1147 = vmatprep.subr.mxu0 0.0
  %1148 = vmatpush2.msra.mxu0 0.0
  %1149 = vmatprep.subr.mxu0 0.0
  %1150 = vmatpush2.msra.mxu0 0.0
  %1151 = vmatprep.subr.mxu0 0.0
  %1152 = vmatpush2.msra.mxu0 0.0
  %1153 = vmatprep.subr.mxu0 0.0
  %1154 = vmatpush2.msra.mxu0 0.0
  %1155 = vmatprep.subr.mxu0 0.0
  %1156 = vmatpush2.msra.mxu0 0.0
  %1157 = vmatprep.subr.mxu0 0.0
  %1158 = vmatpush2.msra.mxu0 0.0
  %1159 = vmatprep.subr.mxu0 0.0
  %1160 = vmatpush2.msra.mxu0 0.0
  %1161 = vmatprep.subr.mxu0 0.0
  %1162 = vmatpush2.msra.mxu0 0.0
  %1163 = vmatprep.subr.mxu0 0.0
  %1164 = vmatpush2.msra.mxu0 0.0
  %1165 = vmatprep.subr.mxu0 0.0
  %1166 = vmatpush2.msra.mxu0 0.0
  %1167 = vmatprep.subr.mxu0 0.0
  %1168 = vmatpush2.msra.mxu0 0.0
  %1169 = vmatprep.subr.mxu0 0.0
  %1170 = vmatpush2.msra.mxu0 0.0
  %1171 = vmatprep.subr.mxu0 0.0
  %1172 = vmatpush2.msra.mxu0 0.0
  %1173 = vmatprep.subr.mxu0 0.0
  %1174 = vmatpush2.msra.mxu0 0.0
  %1175 = vmatprep.subr.mxu0 0.0
  %1176 = vmatpush2.msra.mxu0 0.0
  %1177 = vmatprep.mubr.f32.mxu0 0.0
  %1178 = vmatmul.mubr.f32.gmra.mxu0 %v40
  %v1179 = vpop.f32.mrf.mxu0
  %v1180 = vadd.f32 %v22, %v1179
  %v1181 = vpop.f32.mrf.mxu0
  %1182 = vmatprep.mubr.f32.mxu0 0.0
  %1183 = vmatmul.mubr.f32.gmra.mxu0 %v43
  %v1184 = vpop.f32.mrf.mxu0
  %v1185 = vadd.f32 %v23, %v1184
  %v1186 = vpop.f32.mrf.mxu0
  %1187 = vmatprep.mubr.f32.mxu0 0.0
  %1188 = vmatmul.mubr.f32.gmra.mxu0 %v46
  %v1189 = vpop.f32.mrf.mxu0
  %v1190 = vadd.f32 %v24, %v1189
  %v1191 = vpop.f32.mrf.mxu0
  %1192 = vmatprep.mubr.f32.mxu0 0.0
  %1193 = vmatmul.mubr.f32.gmra.mxu0 %v49
  %v1194 = vpop.f32.mrf.mxu0
  %v1195 = vadd.f32 %v25, %v1194
  %v1196 = vpop.f32.mrf.mxu0
  %1197 = vmatprep.mubr.f32.mxu0 0.0
  %1198 = vmatmul.mubr.f32.gmra.mxu0 %v52
  %v1199 = vpop.f32.mrf.mxu0
  %v1200 = vadd.f32 %v26, %v1199
  %v1201 = vpop.f32.mrf.mxu0
  %1202 = vmatprep.mubr.f32.mxu0 0.0
  %1203 = vmatmul.mubr.f32.gmra.mxu0 %v55
  %v1204 = vpop.f32.mrf.mxu0
  %v1205 = vadd.f32 %v27, %v1204
  %v1206 = vpop.f32.mrf.mxu0
  %1207 = vmatprep.mubr.f32.mxu0 0.0
  %1208 = vmatmul.mubr.f32.gmra.mxu0 %v58
  %v1209 = vpop.f32.mrf.mxu0
  %v1210 = vadd.f32 %v28, %v1209
  %v1211 = vpop.f32.mrf.mxu0
  %1212 = vmatprep.mubr.f32.mxu0 0.0
  %1213 = vmatmul.mubr.f32.gmra.mxu0 %v61
  %v1214 = vpop.f32.mrf.mxu0
  %v1215 = vadd.f32 %v29, %v1214
  %v1216 = vpop.f32.mrf.mxu0
  %1217 = vdwg.mxu0
  %1218 = vmatprep.subr.mxu0 0.0
  %1219 = vmatpush1.msra.mxu0 0.0
  %1220 = vmatprep.subr.mxu0 0.0
  %1221 = vmatpush1.msra.mxu0 0.0
  %1222 = vmatprep.subr.mxu0 0.0
  %1223 = vmatpush1.msra.mxu0 0.0
  %1224 = vmatprep.subr.mxu0 0.0
  %1225 = vmatpush1.msra.mxu0 0.0
  %1226 = vmatprep.subr.mxu0 0.0
  %1227 = vmatpush1.msra.mxu0 0.0
  %1228 = vmatprep.subr.mxu0 0.0
  %1229 = vmatpush1.msra.mxu0 0.0
  %1230 = vmatprep.subr.mxu0 0.0
  %1231 = vmatpush1.msra.mxu0 0.0
  %1232 = vmatprep.subr.mxu0 0.0
  %1233 = vmatpush1.msra.mxu0 0.0
  %1234 = vmatprep.subr.mxu0 0.0
  %1235 = vmatpush1.msra.mxu0 %v1215
  %1236 = vmatprep.subr.mxu0 0.0
  %1237 = vmatpush1.msra.mxu0 %v1210
  %1238 = vmatprep.subr.mxu0 0.0
  %1239 = vmatpush1.msra.mxu0 %v1205
  %1240 = vmatprep.subr.mxu0 0.0
  %1241 = vmatpush1.msra.mxu0 %v1200
  %1242 = vmatprep.subr.mxu0 0.0
  %1243 = vmatpush1.msra.mxu0 %v1195
  %1244 = vmatprep.subr.mxu0 0.0
  %1245 = vmatpush1.msra.mxu0 %v1190
  %1246 = vmatprep.subr.mxu0 0.0
  %1247 = vmatpush1.msra.mxu0 %v1185
  %1248 = vmatprep.subr.mxu0 0.0
  %1249 = vmatpush1.msra.mxu0 %v1180
  %1250 = vmatprep.subr.mxu0 0.0
  %1251 = vmatpush2.msra.mxu0 0.0
  %1252 = vmatprep.subr.mxu0 0.0
  %1253 = vmatpush2.msra.mxu0 0.0
  %1254 = vmatprep.subr.mxu0 0.0
  %1255 = vmatpush2.msra.mxu0 0.0
  %1256 = vmatprep.subr.mxu0 0.0
  %1257 = vmatpush2.msra.mxu0 0.0
  %1258 = vmatprep.subr.mxu0 0.0
  %1259 = vmatpush2.msra.mxu0 0.0
  %1260 = vmatprep.subr.mxu0 0.0
  %1261 = vmatpush2.msra.mxu0 0.0
  %1262 = vmatprep.subr.mxu0 0.0
  %1263 = vmatpush2.msra.mxu0 0.0
  %1264 = vmatprep.subr.mxu0 0.0
  %1265 = vmatpush2.msra.mxu0 0.0
  %1266 = vmatprep.subr.mxu0 0.0
  %1267 = vmatpush2.msra.mxu0 0.0
  %1268 = vmatprep.subr.mxu0 0.0
  %1269 = vmatpush2.msra.mxu0 0.0
  %1270 = vmatprep.subr.mxu0 0.0
  %1271 = vmatpush2.msra.mxu0 0.0
  %1272 = vmatprep.subr.mxu0 0.0
  %1273 = vmatpush2.msra.mxu0 0.0
  %1274 = vmatprep.subr.mxu0 0.0
  %1275 = vmatpush2.msra.mxu0 0.0
  %1276 = vmatprep.subr.mxu0 0.0
  %1277 = vmatpush2.msra.mxu0 0.0
  %1278 = vmatprep.subr.mxu0 0.0
  %1279 = vmatpush2.msra.mxu0 0.0
  %1280 = vmatprep.subr.mxu0 0.0
  %1281 = vmatpush2.msra.mxu0 0.0
  %1282 = vmatprep.mubr.f32.mxu0 0.0
  %1283 = vmatmul.mubr.f32.gmra.mxu0 %v40
  %v1284 = vpop.f32.mrf.mxu0
  %v1285 = vadd.f32 %v22, %v1284
  %v1286 = vpop.f32.mrf.mxu0
  %1287 = vmatprep.mubr.f32.mxu0 0.0
  %1288 = vmatmul.mubr.f32.gmra.mxu0 %v43
  %v1289 = vpop.f32.mrf.mxu0
  %v1290 = vadd.f32 %v23, %v1289
  %v1291 = vpop.f32.mrf.mxu0
  %1292 = vmatprep.mubr.f32.mxu0 0.0
  %1293 = vmatmul.mubr.f32.gmra.mxu0 %v46
  %v1294 = vpop.f32.mrf.mxu0
  %v1295 = vadd.f32 %v24, %v1294
  %v1296 = vpop.f32.mrf.mxu0
  %1297 = vmatprep.mubr.f32.mxu0 0.0
  %1298 = vmatmul.mubr.f32.gmra.mxu0 %v49
  %v1299 = vpop.f32.mrf.mxu0
  %v1300 = vadd.f32 %v25, %v1299
  %v1301 = vpop.f32.mrf.mxu0
  %1302 = vmatprep.mubr.f32.mxu0 0.0
  %1303 = vmatmul.mubr.f32.gmra.mxu0 %v52
  %v1304 = vpop.f32.mrf.mxu0
  %v1305 = vadd.f32 %v26, %v1304
  %v1306 = vpop.f32.mrf.mxu0
  %1307 = vmatprep.mubr.f32.mxu0 0.0
  %1308 = vmatmul.mubr.f32.gmra.mxu0 %v55
  %v1309 = vpop.f32.mrf.mxu0
  %v1310 = vadd.f32 %v27, %v1309
  %v1311 = vpop.f32.mrf.mxu0
  %1312 = vmatprep.mubr.f32.mxu0 0.0
  %1313 = vmatmul.mubr.f32.gmra.mxu0 %v58
  %v1314 = vpop.f32.mrf.mxu0
  %v1315 = vadd.f32 %v28, %v1314
  %v1316 = vpop.f32.mrf.mxu0
  %1317 = vmatprep.mubr.f32.mxu0 0.0
  %1318 = vmatmul.mubr.f32.gmra.mxu0 %v61
  %v1319 = vpop.f32.mrf.mxu0
  %v1320 = vadd.f32 %v29, %v1319
  %v1321 = vpop.f32.mrf.mxu0
  %1322 = vdwg.mxu0
  %1323 = vmatprep.subr.mxu0 0.0
  %1324 = vmatpush1.msra.mxu0 0.0
  %1325 = vmatprep.subr.mxu0 0.0
  %1326 = vmatpush1.msra.mxu0 0.0
  %1327 = vmatprep.subr.mxu0 0.0
  %1328 = vmatpush1.msra.mxu0 0.0
  %1329 = vmatprep.subr.mxu0 0.0
  %1330 = vmatpush1.msra.mxu0 0.0
  %1331 = vmatprep.subr.mxu0 0.0
  %1332 = vmatpush1.msra.mxu0 0.0
  %1333 = vmatprep.subr.mxu0 0.0
  %1334 = vmatpush1.msra.mxu0 0.0
  %1335 = vmatprep.subr.mxu0 0.0
  %1336 = vmatpush1.msra.mxu0 0.0
  %1337 = vmatprep.subr.mxu0 0.0
  %1338 = vmatpush1.msra.mxu0 0.0
  %1339 = vmatprep.subr.mxu0 0.0
  %1340 = vmatpush1.msra.mxu0 %v1320
  %1341 = vmatprep.subr.mxu0 0.0
  %1342 = vmatpush1.msra.mxu0 %v1315
  %1343 = vmatprep.subr.mxu0 0.0
  %1344 = vmatpush1.msra.mxu0 %v1310
  %1345 = vmatprep.subr.mxu0 0.0
  %1346 = vmatpush1.msra.mxu0 %v1305
  %1347 = vmatprep.subr.mxu0 0.0
  %1348 = vmatpush1.msra.mxu0 %v1300
  %1349 = vmatprep.subr.mxu0 0.0
  %1350 = vmatpush1.msra.mxu0 %v1295
  %1351 = vmatprep.subr.mxu0 0.0
  %1352 = vmatpush1.msra.mxu0 %v1290
  %1353 = vmatprep.subr.mxu0 0.0
  %1354 = vmatpush1.msra.mxu0 %v1285
  %1355 = vmatprep.subr.mxu0 0.0
  %1356 = vmatpush2.msra.mxu0 0.0
  %1357 = vmatprep.subr.mxu0 0.0
  %1358 = vmatpush2.msra.mxu0 0.0
  %1359 = vmatprep.subr.mxu0 0.0
  %1360 = vmatpush2.msra.mxu0 0.0
  %1361 = vmatprep.subr.mxu0 0.0
  %1362 = vmatpush2.msra.mxu0 0.0
  %1363 = vmatprep.subr.mxu0 0.0
  %1364 = vmatpush2.msra.mxu0 0.0
  %1365 = vmatprep.subr.mxu0 0.0
  %1366 = vmatpush2.msra.mxu0 0.0
  %1367 = vmatprep.subr.mxu0 0.0
  %1368 = vmatpush2.msra.mxu0 0.0
  %1369 = vmatprep.subr.mxu0 0.0
  %1370 = vmatpush2.msra.mxu0 0.0
  %1371 = vmatprep.subr.mxu0 0.0
  %1372 = vmatpush2.msra.mxu0 0.0
  %1373 = vmatprep.subr.mxu0 0.0
  %1374 = vmatpush2.msra.mxu0 0.0
  %1375 = vmatprep.subr.mxu0 0.0
  %1376 = vmatpush2.msra.mxu0 0.0
  %1377 = vmatprep.subr.mxu0 0.0
  %1378 = vmatpush2.msra.mxu0 0.0
  %1379 = vmatprep.subr.mxu0 0.0
  %1380 = vmatpush2.msra.mxu0 0.0
  %1381 = vmatprep.subr.mxu0 0.0
  %1382 = vmatpush2.msra.mxu0 0.0
  %1383 = vmatprep.subr.mxu0 0.0
  %1384 = vmatpush2.msra.mxu0 0.0
  %1385 = vmatprep.subr.mxu0 0.0
  %1386 = vmatpush2.msra.mxu0 0.0
  %1387 = vmatprep.mubr.f32.mxu0 0.0
  %1388 = vmatmul.mubr.f32.gmra.mxu0 %v40
  %v1389 = vpop.f32.mrf.mxu0
  %v1390 = vadd.f32 %v22, %v1389
  %v1391 = vpop.f32.mrf.mxu0
  %1392 = vmatprep.mubr.f32.mxu0 0.0
  %1393 = vmatmul.mubr.f32.gmra.mxu0 %v43
  %v1394 = vpop.f32.mrf.mxu0
  %v1395 = vadd.f32 %v23, %v1394
  %v1396 = vpop.f32.mrf.mxu0
  %1397 = vmatprep.mubr.f32.mxu0 0.0
  %1398 = vmatmul.mubr.f32.gmra.mxu0 %v46
  %v1399 = vpop.f32.mrf.mxu0
  %v1400 = vadd.f32 %v24, %v1399
  %v1401 = vpop.f32.mrf.mxu0
  %1402 = vmatprep.mubr.f32.mxu0 0.0
  %1403 = vmatmul.mubr.f32.gmra.mxu0 %v49
  %v1404 = vpop.f32.mrf.mxu0
  %v1405 = vadd.f32 %v25, %v1404
  %v1406 = vpop.f32.mrf.mxu0
  %1407 = vmatprep.mubr.f32.mxu0 0.0
  %1408 = vmatmul.mubr.f32.gmra.mxu0 %v52
  %v1409 = vpop.f32.mrf.mxu0
  %v1410 = vadd.f32 %v26, %v1409
  %v1411 = vpop.f32.mrf.mxu0
  %1412 = vmatprep.mubr.f32.mxu0 0.0
  %1413 = vmatmul.mubr.f32.gmra.mxu0 %v55
  %v1414 = vpop.f32.mrf.mxu0
  %v1415 = vadd.f32 %v27, %v1414
  %v1416 = vpop.f32.mrf.mxu0
  %1417 = vmatprep.mubr.f32.mxu0 0.0
  %1418 = vmatmul.mubr.f32.gmra.mxu0 %v58
  %v1419 = vpop.f32.mrf.mxu0
  %v1420 = vadd.f32 %v28, %v1419
  %v1421 = vpop.f32.mrf.mxu0
  %1422 = vmatprep.mubr.f32.mxu0 0.0
  %1423 = vmatmul.mubr.f32.gmra.mxu0 %v61
  %v1424 = vpop.f32.mrf.mxu0
  %v1425 = vadd.f32 %v29, %v1424
  %v1426 = vpop.f32.mrf.mxu0
  %1427 = vdwg.mxu0
  %1428 = vmatprep.subr.mxu0 0.0
  %1429 = vmatpush1.msra.mxu0 0.0
  %1430 = vmatprep.subr.mxu0 0.0
  %1431 = vmatpush1.msra.mxu0 0.0
  %1432 = vmatprep.subr.mxu0 0.0
  %1433 = vmatpush1.msra.mxu0 0.0
  %1434 = vmatprep.subr.mxu0 0.0
  %1435 = vmatpush1.msra.mxu0 0.0
  %1436 = vmatprep.subr.mxu0 0.0
  %1437 = vmatpush1.msra.mxu0 0.0
  %1438 = vmatprep.subr.mxu0 0.0
  %1439 = vmatpush1.msra.mxu0 0.0
  %1440 = vmatprep.subr.mxu0 0.0
  %1441 = vmatpush1.msra.mxu0 0.0
  %1442 = vmatprep.subr.mxu0 0.0
  %1443 = vmatpush1.msra.mxu0 0.0
  %1444 = vmatprep.subr.mxu0 0.0
  %1445 = vmatpush1.msra.mxu0 %v1425
  %1446 = vmatprep.subr.mxu0 0.0
  %1447 = vmatpush1.msra.mxu0 %v1420
  %1448 = vmatprep.subr.mxu0 0.0
  %1449 = vmatpush1.msra.mxu0 %v1415
  %1450 = vmatprep.subr.mxu0 0.0
  %1451 = vmatpush1.msra.mxu0 %v1410
  %1452 = vmatprep.subr.mxu0 0.0
  %1453 = vmatpush1.msra.mxu0 %v1405
  %1454 = vmatprep.subr.mxu0 0.0
  %1455 = vmatpush1.msra.mxu0 %v1400
  %1456 = vmatprep.subr.mxu0 0.0
  %1457 = vmatpush1.msra.mxu0 %v1395
  %1458 = vmatprep.subr.mxu0 0.0
  %1459 = vmatpush1.msra.mxu0 %v1390
  %1460 = vmatprep.subr.mxu0 0.0
  %1461 = vmatpush2.msra.mxu0 0.0
  %1462 = vmatprep.subr.mxu0 0.0
  %1463 = vmatpush2.msra.mxu0 0.0
  %1464 = vmatprep.subr.mxu0 0.0
  %1465 = vmatpush2.msra.mxu0 0.0
  %1466 = vmatprep.subr.mxu0 0.0
  %1467 = vmatpush2.msra.mxu0 0.0
  %1468 = vmatprep.subr.mxu0 0.0
  %1469 = vmatpush2.msra.mxu0 0.0
  %1470 = vmatprep.subr.mxu0 0.0
  %1471 = vmatpush2.msra.mxu0 0.0
  %1472 = vmatprep.subr.mxu0 0.0
  %1473 = vmatpush2.msra.mxu0 0.0
  %1474 = vmatprep.subr.mxu0 0.0
  %1475 = vmatpush2.msra.mxu0 0.0
  %1476 = vmatprep.subr.mxu0 0.0
  %1477 = vmatpush2.msra.mxu0 0.0
  %1478 = vmatprep.subr.mxu0 0.0
  %1479 = vmatpush2.msra.mxu0 0.0
  %1480 = vmatprep.subr.mxu0 0.0
  %1481 = vmatpush2.msra.mxu0 0.0
  %1482 = vmatprep.subr.mxu0 0.0
  %1483 = vmatpush2.msra.mxu0 0.0
  %1484 = vmatprep.subr.mxu0 0.0
  %1485 = vmatpush2.msra.mxu0 0.0
  %1486 = vmatprep.subr.mxu0 0.0
  %1487 = vmatpush2.msra.mxu0 0.0
  %1488 = vmatprep.subr.mxu0 0.0
  %1489 = vmatpush2.msra.mxu0 0.0
  %1490 = vmatprep.subr.mxu0 0.0
  %1491 = vmatpush2.msra.mxu0 0.0
  %1492 = vmatprep.mubr.f32.mxu0 0.0
  %1493 = vmatmul.mubr.f32.gmra.mxu0 %v40
  %v1494 = vpop.f32.mrf.mxu0
  %v1495 = vadd.f32 %v22, %v1494
  %v1496 = vpop.f32.mrf.mxu0
  %1497 = vmatprep.mubr.f32.mxu0 0.0
  %1498 = vmatmul.mubr.f32.gmra.mxu0 %v43
  %v1499 = vpop.f32.mrf.mxu0
  %v1500 = vadd.f32 %v23, %v1499
  %v1501 = vpop.f32.mrf.mxu0
  %1502 = vmatprep.mubr.f32.mxu0 0.0
  %1503 = vmatmul.mubr.f32.gmra.mxu0 %v46
  %v1504 = vpop.f32.mrf.mxu0
  %v1505 = vadd.f32 %v24, %v1504
  %v1506 = vpop.f32.mrf.mxu0
  %1507 = vmatprep.mubr.f32.mxu0 0.0
  %1508 = vmatmul.mubr.f32.gmra.mxu0 %v49
  %v1509 = vpop.f32.mrf.mxu0
  %v1510 = vadd.f32 %v25, %v1509
  %v1511 = vpop.f32.mrf.mxu0
  %1512 = vmatprep.mubr.f32.mxu0 0.0
  %1513 = vmatmul.mubr.f32.gmra.mxu0 %v52
  %v1514 = vpop.f32.mrf.mxu0
  %v1515 = vadd.f32 %v26, %v1514
  %v1516 = vpop.f32.mrf.mxu0
  %1517 = vmatprep.mubr.f32.mxu0 0.0
  %1518 = vmatmul.mubr.f32.gmra.mxu0 %v55
  %v1519 = vpop.f32.mrf.mxu0
  %v1520 = vadd.f32 %v27, %v1519
  %v1521 = vpop.f32.mrf.mxu0
  %1522 = vmatprep.mubr.f32.mxu0 0.0
  %1523 = vmatmul.mubr.f32.gmra.mxu0 %v58
  %v1524 = vpop.f32.mrf.mxu0
  %v1525 = vadd.f32 %v28, %v1524
  %v1526 = vpop.f32.mrf.mxu0
  %1527 = vmatprep.mubr.f32.mxu0 0.0
  %1528 = vmatmul.mubr.f32.gmra.mxu0 %v61
  %v1529 = vpop.f32.mrf.mxu0
  %v1530 = vadd.f32 %v29, %v1529
  %v1531 = vpop.f32.mrf.mxu0
  %1532 = vdwg.mxu0
  %1533 = vmatprep.subr.mxu0 0.0
  %1534 = vmatpush1.msra.mxu0 0.0
  %1535 = vmatprep.subr.mxu0 0.0
  %1536 = vmatpush1.msra.mxu0 0.0
  %1537 = vmatprep.subr.mxu0 0.0
  %1538 = vmatpush1.msra.mxu0 0.0
  %1539 = vmatprep.subr.mxu0 0.0
  %1540 = vmatpush1.msra.mxu0 0.0
  %1541 = vmatprep.subr.mxu0 0.0
  %1542 = vmatpush1.msra.mxu0 0.0
  %1543 = vmatprep.subr.mxu0 0.0
  %1544 = vmatpush1.msra.mxu0 0.0
  %1545 = vmatprep.subr.mxu0 0.0
  %1546 = vmatpush1.msra.mxu0 0.0
  %1547 = vmatprep.subr.mxu0 0.0
  %1548 = vmatpush1.msra.mxu0 0.0
  %1549 = vmatprep.subr.mxu0 0.0
  %1550 = vmatpush1.msra.mxu0 %v1530
  %1551 = vmatprep.subr.mxu0 0.0
  %1552 = vmatpush1.msra.mxu0 %v1525
  %1553 = vmatprep.subr.mxu0 0.0
  %1554 = vmatpush1.msra.mxu0 %v1520
  %1555 = vmatprep.subr.mxu0 0.0
  %1556 = vmatpush1.msra.mxu0 %v1515
  %1557 = vmatprep.subr.mxu0 0.0
  %1558 = vmatpush1.msra.mxu0 %v1510
  %1559 = vmatprep.subr.mxu0 0.0
  %1560 = vmatpush1.msra.mxu0 %v1505
  %1561 = vmatprep.subr.mxu0 0.0
  %1562 = vmatpush1.msra.mxu0 %v1500
  %1563 = vmatprep.subr.mxu0 0.0
  %1564 = vmatpush1.msra.mxu0 %v1495
  %1565 = vmatprep.subr.mxu0 0.0
  %1566 = vmatpush2.msra.mxu0 0.0
  %1567 = vmatprep.subr.mxu0 0.0
  %1568 = vmatpush2.msra.mxu0 0.0
  %1569 = vmatprep.subr.mxu0 0.0
  %1570 = vmatpush2.msra.mxu0 0.0
  %1571 = vmatprep.subr.mxu0 0.0
  %1572 = vmatpush2.msra.mxu0 0.0
  %1573 = vmatprep.subr.mxu0 0.0
  %1574 = vmatpush2.msra.mxu0 0.0
  %1575 = vmatprep.subr.mxu0 0.0
  %1576 = vmatpush2.msra.mxu0 0.0
  %1577 = vmatprep.subr.mxu0 0.0
  %1578 = vmatpush2.msra.mxu0 0.0
  %1579 = vmatprep.subr.mxu0 0.0
  %1580 = vmatpush2.msra.mxu0 0.0
  %1581 = vmatprep.subr.mxu0 0.0
  %1582 = vmatpush2.msra.mxu0 0.0
  %1583 = vmatprep.subr.mxu0 0.0
  %1584 = vmatpush2.msra.mxu0 0.0
  %1585 = vmatprep.subr.mxu0 0.0
  %1586 = vmatpush2.msra.mxu0 0.0
  %1587 = vmatprep.subr.mxu0 0.0
  %1588 = vmatpush2.msra.mxu0 0.0
  %1589 = vmatprep.subr.mxu0 0.0
  %1590 = vmatpush2.msra.mxu0 0.0
  %1591 = vmatprep.subr.mxu0 0.0
  %1592 = vmatpush2.msra.mxu0 0.0
  %1593 = vmatprep.subr.mxu0 0.0
  %1594 = vmatpush2.msra.mxu0 0.0
  %1595 = vmatprep.subr.mxu0 0.0
  %1596 = vmatpush2.msra.mxu0 0.0
  %1597 = vmatprep.mubr.f32.mxu0 0.0
  %1598 = vmatmul.mubr.f32.gmra.mxu0 %v40
  %v1599 = vpop.f32.mrf.mxu0
  %v1600 = vadd.f32 %v22, %v1599
  %v1601 = vpop.f32.mrf.mxu0
  %1602 = vmatprep.mubr.f32.mxu0 0.0
  %1603 = vmatmul.mubr.f32.gmra.mxu0 %v43
  %v1604 = vpop.f32.mrf.mxu0
  %v1605 = vadd.f32 %v23, %v1604
  %v1606 = vpop.f32.mrf.mxu0
  %1607 = vmatprep.mubr.f32.mxu0 0.0
  %1608 = vmatmul.mubr.f32.gmra.mxu0 %v46
  %v1609 = vpop.f32.mrf.mxu0
  %v1610 = vadd.f32 %v24, %v1609
  %v1611 = vpop.f32.mrf.mxu0
  %1612 = vmatprep.mubr.f32.mxu0 0.0
  %1613 = vmatmul.mubr.f32.gmra.mxu0 %v49
  %v1614 = vpop.f32.mrf.mxu0
  %v1615 = vadd.f32 %v25, %v1614
  %v1616 = vpop.f32.mrf.mxu0
  %1617 = vmatprep.mubr.f32.mxu0 0.0
  %1618 = vmatmul.mubr.f32.gmra.mxu0 %v52
  %v1619 = vpop.f32.mrf.mxu0
  %v1620 = vadd.f32 %v26, %v1619
  %v1621 = vpop.f32.mrf.mxu0
  %1622 = vmatprep.mubr.f32.mxu0 0.0
  %1623 = vmatmul.mubr.f32.gmra.mxu0 %v55
  %v1624 = vpop.f32.mrf.mxu0
  %v1625 = vadd.f32 %v27, %v1624
  %v1626 = vpop.f32.mrf.mxu0
  %1627 = vmatprep.mubr.f32.mxu0 0.0
  %1628 = vmatmul.mubr.f32.gmra.mxu0 %v58
  %v1629 = vpop.f32.mrf.mxu0
  %v1630 = vadd.f32 %v28, %v1629
  %v1631 = vpop.f32.mrf.mxu0
  %1632 = vmatprep.mubr.f32.mxu0 0.0
  %1633 = vmatmul.mubr.f32.gmra.mxu0 %v61
  %v1634 = vpop.f32.mrf.mxu0
  %v1635 = vadd.f32 %v29, %v1634
  %v1636 = vpop.f32.mrf.mxu0
  %1637 = vdwg.mxu0
  %1638 = vmatprep.subr.mxu0 0.0
  %1639 = vmatpush1.msra.mxu0 0.0
  %1640 = vmatprep.subr.mxu0 0.0
  %1641 = vmatpush1.msra.mxu0 0.0
  %1642 = vmatprep.subr.mxu0 0.0
  %1643 = vmatpush1.msra.mxu0 0.0
  %1644 = vmatprep.subr.mxu0 0.0
  %1645 = vmatpush1.msra.mxu0 0.0
  %1646 = vmatprep.subr.mxu0 0.0
  %1647 = vmatpush1.msra.mxu0 0.0
  %1648 = vmatprep.subr.mxu0 0.0
  %1649 = vmatpush1.msra.mxu0 0.0
  %1650 = vmatprep.subr.mxu0 0.0
  %1651 = vmatpush1.msra.mxu0 0.0
  %1652 = vmatprep.subr.mxu0 0.0
  %1653 = vmatpush1.msra.mxu0 0.0
  %1654 = vmatprep.subr.mxu0 0.0
  %1655 = vmatpush1.msra.mxu0 %v1635
  %1656 = vmatprep.subr.mxu0 0.0
  %1657 = vmatpush1.msra.mxu0 %v1630
  %1658 = vmatprep.subr.mxu0 0.0
  %1659 = vmatpush1.msra.mxu0 %v1625
  %1660 = vmatprep.subr.mxu0 0.0
  %1661 = vmatpush1.msra.mxu0 %v1620
  %1662 = vmatprep.subr.mxu0 0.0
  %1663 = vmatpush1.msra.mxu0 %v1615
  %1664 = vmatprep.subr.mxu0 0.0
  %1665 = vmatpush1.msra.mxu0 %v1610
  %1666 = vmatprep.subr.mxu0 0.0
  %1667 = vmatpush1.msra.mxu0 %v1605
  %1668 = vmatprep.subr.mxu0 0.0
  %1669 = vmatpush1.msra.mxu0 %v1600
  %1670 = vmatprep.subr.mxu0 0.0
  %1671 = vmatpush2.msra.mxu0 0.0
  %1672 = vmatprep.subr.mxu0 0.0
  %1673 = vmatpush2.msra.mxu0 0.0
  %1674 = vmatprep.subr.mxu0 0.0
  %1675 = vmatpush2.msra.mxu0 0.0
  %1676 = vmatprep.subr.mxu0 0.0
  %1677 = vmatpush2.msra.mxu0 0.0
  %1678 = vmatprep.subr.mxu0 0.0
  %1679 = vmatpush2.msra.mxu0 0.0
  %1680 = vmatprep.subr.mxu0 0.0
  %1681 = vmatpush2.msra.mxu0 0.0
  %1682 = vmatprep.subr.mxu0 0.0
  %1683 = vmatpush2.msra.mxu0 0.0
  %1684 = vmatprep.subr.mxu0 0.0
  %1685 = vmatpush2.msra.mxu0 0.0
  %1686 = vmatprep.subr.mxu0 0.0
  %1687 = vmatpush2.msra.mxu0 0.0
  %1688 = vmatprep.subr.mxu0 0.0
  %1689 = vmatpush2.msra.mxu0 0.0
  %1690 = vmatprep.subr.mxu0 0.0
  %1691 = vmatpush2.msra.mxu0 0.0
  %1692 = vmatprep.subr.mxu0 0.0
  %1693 = vmatpush2.msra.mxu0 0.0
  %1694 = vmatprep.subr.mxu0 0.0
  %1695 = vmatpush2.msra.mxu0 0.0
  %1696 = vmatprep.subr.mxu0 0.0
  %1697 = vmatpush2.msra.mxu0 0.0
  %1698 = vmatprep.subr.mxu0 0.0
  %1699 = vmatpush2.msra.mxu0 0.0
  %1700 = vmatprep.subr.mxu0 0.0
  %1701 = vmatpush2.msra.mxu0 0.0
  %1702 = vmatprep.mubr.f32.mxu0 0.0
  %1703 = vmatmul.mubr.f32.gmra.mxu0 %v40
  %v1704 = vpop.f32.mrf.mxu0
  %v1705 = vadd.f32 %v22, %v1704
  %v1706 = vpop.f32.mrf.mxu0
  %1707 = vmatprep.mubr.f32.mxu0 0.0
  %1708 = vmatmul.mubr.f32.gmra.mxu0 %v43
  %v1709 = vpop.f32.mrf.mxu0
  %v1710 = vadd.f32 %v23, %v1709
  %v1711 = vpop.f32.mrf.mxu0
  %1712 = vmatprep.mubr.f32.mxu0 0.0
  %1713 = vmatmul.mubr.f32.gmra.mxu0 %v46
  %v1714 = vpop.f32.mrf.mxu0
  %v1715 = vadd.f32 %v24, %v1714
  %v1716 = vpop.f32.mrf.mxu0
  %1717 = vmatprep.mubr.f32.mxu0 0.0
  %1718 = vmatmul.mubr.f32.gmra.mxu0 %v49
  %v1719 = vpop.f32.mrf.mxu0
  %v1720 = vadd.f32 %v25, %v1719
  %v1721 = vpop.f32.mrf.mxu0
  %1722 = vmatprep.mubr.f32.mxu0 0.0
  %1723 = vmatmul.mubr.f32.gmra.mxu0 %v52
  %v1724 = vpop.f32.mrf.mxu0
  %v1725 = vadd.f32 %v26, %v1724
  %v1726 = vpop.f32.mrf.mxu0
  %1727 = vmatprep.mubr.f32.mxu0 0.0
  %1728 = vmatmul.mubr.f32.gmra.mxu0 %v55
  %v1729 = vpop.f32.mrf.mxu0
  %v1730 = vadd.f32 %v27, %v1729
  %v1731 = vpop.f32.mrf.mxu0
  %1732 = vmatprep.mubr.f32.mxu0 0.0
  %1733 = vmatmul.mubr.f32.gmra.mxu0 %v58
  %v1734 = vpop.f32.mrf.mxu0
  %v1735 = vadd.f32 %v28, %v1734
  %v1736 = vpop.f32.mrf.mxu0
  %1737 = vmatprep.mubr.f32.mxu0 0.0
  %1738 = vmatmul.mubr.f32.gmra.mxu0 %v61
  %v1739 = vpop.f32.mrf.mxu0
  %v1740 = vadd.f32 %v29, %v1739
  %v1741 = vpop.f32.mrf.mxu0
  %1742 = vdwg.mxu0
  %1743 = vmatprep.subr.mxu0 0.0
  %1744 = vmatpush1.msra.mxu0 0.0
  %1745 = vmatprep.subr.mxu0 0.0
  %1746 = vmatpush1.msra.mxu0 0.0
  %1747 = vmatprep.subr.mxu0 0.0
  %1748 = vmatpush1.msra.mxu0 0.0
  %1749 = vmatprep.subr.mxu0 0.0
  %1750 = vmatpush1.msra.mxu0 0.0
  %1751 = vmatprep.subr.mxu0 0.0
  %1752 = vmatpush1.msra.mxu0 0.0
  %1753 = vmatprep.subr.mxu0 0.0
  %1754 = vmatpush1.msra.mxu0 0.0
  %1755 = vmatprep.subr.mxu0 0.0
  %1756 = vmatpush1.msra.mxu0 0.0
  %1757 = vmatprep.subr.mxu0 0.0
  %1758 = vmatpush1.msra.mxu0 0.0
  %1759 = vmatprep.subr.mxu0 0.0
  %1760 = vmatpush1.msra.mxu0 %v1740
  %1761 = vmatprep.subr.mxu0 0.0
  %1762 = vmatpush1.msra.mxu0 %v1735
  %1763 = vmatprep.subr.mxu0 0.0
  %1764 = vmatpush1.msra.mxu0 %v1730
  %1765 = vmatprep.subr.mxu0 0.0
  %1766 = vmatpush1.msra.mxu0 %v1725
  %1767 = vmatprep.subr.mxu0 0.0
  %1768 = vmatpush1.msra.mxu0 %v1720
  %1769 = vmatprep.subr.mxu0 0.0
  %1770 = vmatpush1.msra.mxu0 %v1715
  %1771 = vmatprep.subr.mxu0 0.0
  %1772 = vmatpush1.msra.mxu0 %v1710
  %1773 = vmatprep.subr.mxu0 0.0
  %1774 = vmatpush1.msra.mxu0 %v1705
  %1775 = vmatprep.subr.mxu0 0.0
  %1776 = vmatpush2.msra.mxu0 0.0
  %1777 = vmatprep.subr.mxu0 0.0
  %1778 = vmatpush2.msra.mxu0 0.0
  %1779 = vmatprep.subr.mxu0 0.0
  %1780 = vmatpush2.msra.mxu0 0.0
  %1781 = vmatprep.subr.mxu0 0.0
  %1782 = vmatpush2.msra.mxu0 0.0
  %1783 = vmatprep.subr.mxu0 0.0
  %1784 = vmatpush2.msra.mxu0 0.0
  %1785 = vmatprep.subr.mxu0 0.0
  %1786 = vmatpush2.msra.mxu0 0.0
  %1787 = vmatprep.subr.mxu0 0.0
  %1788 = vmatpush2.msra.mxu0 0.0
  %1789 = vmatprep.subr.mxu0 0.0
  %1790 = vmatpush2.msra.mxu0 0.0
  %1791 = vmatprep.subr.mxu0 0.0
  %1792 = vmatpush2.msra.mxu0 0.0
  %1793 = vmatprep.subr.mxu0 0.0
  %1794 = vmatpush2.msra.mxu0 0.0
  %1795 = vmatprep.subr.mxu0 0.0
  %1796 = vmatpush2.msra.mxu0 0.0
  %1797 = vmatprep.subr.mxu0 0.0
  %1798 = vmatpush2.msra.mxu0 0.0
  %1799 = vmatprep.subr.mxu0 0.0
  %1800 = vmatpush2.msra.mxu0 0.0
  %1801 = vmatprep.subr.mxu0 0.0
  %1802 = vmatpush2.msra.mxu0 0.0
  %1803 = vmatprep.subr.mxu0 0.0
  %1804 = vmatpush2.msra.mxu0 0.0
  %1805 = vmatprep.subr.mxu0 0.0
  %1806 = vmatpush2.msra.mxu0 0.0
  %1807 = vmatprep.mubr.f32.mxu0 0.0
  %1808 = vmatmul.mubr.f32.gmra.mxu0 %v40
  %v1809 = vpop.f32.mrf.mxu0
  %v1810 = vadd.f32 %v22, %v1809
  %v1811 = vpop.f32.mrf.mxu0
  %1812 = vmatprep.mubr.f32.mxu0 0.0
  %1813 = vmatmul.mubr.f32.gmra.mxu0 %v43
  %v1814 = vpop.f32.mrf.mxu0
  %v1815 = vadd.f32 %v23, %v1814
  %v1816 = vpop.f32.mrf.mxu0
  %1817 = vmatprep.mubr.f32.mxu0 0.0
  %1818 = vmatmul.mubr.f32.gmra.mxu0 %v46
  %v1819 = vpop.f32.mrf.mxu0
  %v1820 = vadd.f32 %v24, %v1819
  %v1821 = vpop.f32.mrf.mxu0
  %1822 = vmatprep.mubr.f32.mxu0 0.0
  %1823 = vmatmul.mubr.f32.gmra.mxu0 %v49
  %v1824 = vpop.f32.mrf.mxu0
  %v1825 = vadd.f32 %v25, %v1824
  %v1826 = vpop.f32.mrf.mxu0
  %1827 = vmatprep.mubr.f32.mxu0 0.0
  %1828 = vmatmul.mubr.f32.gmra.mxu0 %v52
  %v1829 = vpop.f32.mrf.mxu0
  %v1830 = vadd.f32 %v26, %v1829
  %v1831 = vpop.f32.mrf.mxu0
  %1832 = vmatprep.mubr.f32.mxu0 0.0
  %1833 = vmatmul.mubr.f32.gmra.mxu0 %v55
  %v1834 = vpop.f32.mrf.mxu0
  %v1835 = vadd.f32 %v27, %v1834
  %v1836 = vpop.f32.mrf.mxu0
  %1837 = vmatprep.mubr.f32.mxu0 0.0
  %1838 = vmatmul.mubr.f32.gmra.mxu0 %v58
  %v1839 = vpop.f32.mrf.mxu0
  %v1840 = vadd.f32 %v28, %v1839
  %v1841 = vpop.f32.mrf.mxu0
  %1842 = vmatprep.mubr.f32.mxu0 0.0
  %1843 = vmatmul.mubr.f32.gmra.mxu0 %v61
  %v1844 = vpop.f32.mrf.mxu0
  %v1845 = vadd.f32 %v29, %v1844
  %v1846 = vpop.f32.mrf.mxu0
  %1847 = vdwg.mxu0
  %1848 = vmatprep.subr.mxu0 0.0
  %1849 = vmatpush1.msra.mxu0 0.0
  %1850 = vmatprep.subr.mxu0 0.0
  %1851 = vmatpush1.msra.mxu0 0.0
  %1852 = vmatprep.subr.mxu0 0.0
  %1853 = vmatpush1.msra.mxu0 0.0
  %1854 = vmatprep.subr.mxu0 0.0
  %1855 = vmatpush1.msra.mxu0 0.0
  %1856 = vmatprep.subr.mxu0 0.0
  %1857 = vmatpush1.msra.mxu0 0.0
  %1858 = vmatprep.subr.mxu0 0.0
  %1859 = vmatpush1.msra.mxu0 0.0
  %1860 = vmatprep.subr.mxu0 0.0
  %1861 = vmatpush1.msra.mxu0 0.0
  %1862 = vmatprep.subr.mxu0 0.0
  %1863 = vmatpush1.msra.mxu0 0.0
  %1864 = vmatprep.subr.mxu0 0.0
  %1865 = vmatpush1.msra.mxu0 %v1845
  %1866 = vmatprep.subr.mxu0 0.0
  %1867 = vmatpush1.msra.mxu0 %v1840
  %1868 = vmatprep.subr.mxu0 0.0
  %1869 = vmatpush1.msra.mxu0 %v1835
  %1870 = vmatprep.subr.mxu0 0.0
  %1871 = vmatpush1.msra.mxu0 %v1830
  %1872 = vmatprep.subr.mxu0 0.0
  %1873 = vmatpush1.msra.mxu0 %v1825
  %1874 = vmatprep.subr.mxu0 0.0
  %1875 = vmatpush1.msra.mxu0 %v1820
  %1876 = vmatprep.subr.mxu0 0.0
  %1877 = vmatpush1.msra.mxu0 %v1815
  %1878 = vmatprep.subr.mxu0 0.0
  %1879 = vmatpush1.msra.mxu0 %v1810
  %1880 = vmatprep.subr.mxu0 0.0
  %1881 = vmatpush2.msra.mxu0 0.0
  %1882 = vmatprep.subr.mxu0 0.0
  %1883 = vmatpush2.msra.mxu0 0.0
  %1884 = vmatprep.subr.mxu0 0.0
  %1885 = vmatpush2.msra.mxu0 0.0
  %1886 = vmatprep.subr.mxu0 0.0
  %1887 = vmatpush2.msra.mxu0 0.0
  %1888 = vmatprep.subr.mxu0 0.0
  %1889 = vmatpush2.msra.mxu0 0.0
  %1890 = vmatprep.subr.mxu0 0.0
  %1891 = vmatpush2.msra.mxu0 0.0
  %1892 = vmatprep.subr.mxu0 0.0
  %1893 = vmatpush2.msra.mxu0 0.0
  %1894 = vmatprep.subr.mxu0 0.0
  %1895 = vmatpush2.msra.mxu0 0.0
  %1896 = vmatprep.subr.mxu0 0.0
  %1897 = vmatpush2.msra.mxu0 0.0
  %1898 = vmatprep.subr.mxu0 0.0
  %1899 = vmatpush2.msra.mxu0 0.0
  %1900 = vmatprep.subr.mxu0 0.0
  %1901 = vmatpush2.msra.mxu0 0.0
  %1902 = vmatprep.subr.mxu0 0.0
  %1903 = vmatpush2.msra.mxu0 0.0
  %1904 = vmatprep.subr.mxu0 0.0
  %1905 = vmatpush2.msra.mxu0 0.0
  %1906 = vmatprep.subr.mxu0 0.0
  %1907 = vmatpush2.msra.mxu0 0.0
  %1908 = vmatprep.subr.mxu0 0.0
  %1909 = vmatpush2.msra.mxu0 0.0
  %1910 = vmatprep.subr.mxu0 0.0
  %1911 = vmatpush2.msra.mxu0 0.0
  %1912 = vmatprep.mubr.f32.mxu0 0.0
  %1913 = vmatmul.mubr.f32.gmra.mxu0 %v40
  %v1914 = vpop.f32.mrf.mxu0
  %v1915 = vadd.f32 %v22, %v1914
  %v1916 = vpop.f32.mrf.mxu0
  %1917 = vmatprep.mubr.f32.mxu0 0.0
  %1918 = vmatmul.mubr.f32.gmra.mxu0 %v43
  %v1919 = vpop.f32.mrf.mxu0
  %v1920 = vadd.f32 %v23, %v1919
  %v1921 = vpop.f32.mrf.mxu0
  %1922 = vmatprep.mubr.f32.mxu0 0.0
  %1923 = vmatmul.mubr.f32.gmra.mxu0 %v46
  %v1924 = vpop.f32.mrf.mxu0
  %v1925 = vadd.f32 %v24, %v1924
  %v1926 = vpop.f32.mrf.mxu0
  %1927 = vmatprep.mubr.f32.mxu0 0.0
  %1928 = vmatmul.mubr.f32.gmra.mxu0 %v49
  %v1929 = vpop.f32.mrf.mxu0
  %v1930 = vadd.f32 %v25, %v1929
  %v1931 = vpop.f32.mrf.mxu0
  %1932 = vmatprep.mubr.f32.mxu0 0.0
  %1933 = vmatmul.mubr.f32.gmra.mxu0 %v52
  %v1934 = vpop.f32.mrf.mxu0
  %v1935 = vadd.f32 %v26, %v1934
  %v1936 = vpop.f32.mrf.mxu0
  %1937 = vmatprep.mubr.f32.mxu0 0.0
  %1938 = vmatmul.mubr.f32.gmra.mxu0 %v55
  %v1939 = vpop.f32.mrf.mxu0
  %v1940 = vadd.f32 %v27, %v1939
  %v1941 = vpop.f32.mrf.mxu0
  %1942 = vmatprep.mubr.f32.mxu0 0.0
  %1943 = vmatmul.mubr.f32.gmra.mxu0 %v58
  %v1944 = vpop.f32.mrf.mxu0
  %v1945 = vadd.f32 %v28, %v1944
  %v1946 = vpop.f32.mrf.mxu0
  %1947 = vmatprep.mubr.f32.mxu0 0.0
  %1948 = vmatmul.mubr.f32.gmra.mxu0 %v61
  %v1949 = vpop.f32.mrf.mxu0
  %v1950 = vadd.f32 %v29, %v1949
  %v1951 = vpop.f32.mrf.mxu0
  %1952 = vdwg.mxu0
  %1953 = vmatprep.subr.mxu0 0.0
  %1954 = vmatpush1.msra.mxu0 0.0
  %1955 = vmatprep.subr.mxu0 0.0
  %1956 = vmatpush1.msra.mxu0 0.0
  %1957 = vmatprep.subr.mxu0 0.0
  %1958 = vmatpush1.msra.mxu0 0.0
  %1959 = vmatprep.subr.mxu0 0.0
  %1960 = vmatpush1.msra.mxu0 0.0
  %1961 = vmatprep.subr.mxu0 0.0
  %1962 = vmatpush1.msra.mxu0 0.0
  %1963 = vmatprep.subr.mxu0 0.0
  %1964 = vmatpush1.msra.mxu0 0.0
  %1965 = vmatprep.subr.mxu0 0.0
  %1966 = vmatpush1.msra.mxu0 0.0
  %1967 = vmatprep.subr.mxu0 0.0
  %1968 = vmatpush1.msra.mxu0 0.0
  %1969 = vmatprep.subr.mxu0 0.0
  %1970 = vmatpush1.msra.mxu0 %v1950
  %1971 = vmatprep.subr.mxu0 0.0
  %1972 = vmatpush1.msra.mxu0 %v1945
  %1973 = vmatprep.subr.mxu0 0.0
  %1974 = vmatpush1.msra.mxu0 %v1940
  %1975 = vmatprep.subr.mxu0 0.0
  %1976 = vmatpush1.msra.mxu0 %v1935
  %1977 = vmatprep.subr.mxu0 0.0
  %1978 = vmatpush1.msra.mxu0 %v1930
  %1979 = vmatprep.subr.mxu0 0.0
  %1980 = vmatpush1.msra.mxu0 %v1925
  %1981 = vmatprep.subr.mxu0 0.0
  %1982 = vmatpush1.msra.mxu0 %v1920
  %1983 = vmatprep.subr.mxu0 0.0
  %1984 = vmatpush1.msra.mxu0 %v1915
  %1985 = vmatprep.subr.mxu0 0.0
  %1986 = vmatpush2.msra.mxu0 0.0
  %1987 = vmatprep.subr.mxu0 0.0
  %1988 = vmatpush2.msra.mxu0 0.0
  %1989 = vmatprep.subr.mxu0 0.0
  %1990 = vmatpush2.msra.mxu0 0.0
  %1991 = vmatprep.subr.mxu0 0.0
  %1992 = vmatpush2.msra.mxu0 0.0
  %1993 = vmatprep.subr.mxu0 0.0
  %1994 = vmatpush2.msra.mxu0 0.0
  %1995 = vmatprep.subr.mxu0 0.0
  %1996 = vmatpush2.msra.mxu0 0.0
  %1997 = vmatprep.subr.mxu0 0.0
  %1998 = vmatpush2.msra.mxu0 0.0
  %1999 = vmatprep.subr.mxu0 0.0
  %2000 = vmatpush2.msra.mxu0 0.0
  %2001 = vmatprep.subr.mxu0 0.0
  %2002 = vmatpush2.msra.mxu0 0.0
  %2003 = vmatprep.subr.mxu0 0.0
  %2004 = vmatpush2.msra.mxu0 0.0
  %2005 = vmatprep.subr.mxu0 0.0
  %2006 = vmatpush2.msra.mxu0 0.0
  %2007 = vmatprep.subr.mxu0 0.0
  %2008 = vmatpush2.msra.mxu0 0.0
  %2009 = vmatprep.subr.mxu0 0.0
  %2010 = vmatpush2.msra.mxu0 0.0
  %2011 = vmatprep.subr.mxu0 0.0
  %2012 = vmatpush2.msra.mxu0 0.0
  %2013 = vmatprep.subr.mxu0 0.0
  %2014 = vmatpush2.msra.mxu0 0.0
  %2015 = vmatprep.subr.mxu0 0.0
  %2016 = vmatpush2.msra.mxu0 0.0
  %2017 = vmatprep.mubr.f32.mxu0 0.0
  %2018 = vmatmul.mubr.f32.gmra.mxu0 %v40
  %v2019 = vpop.f32.mrf.mxu0
  %v2020 = vadd.f32 %v22, %v2019
  %v2021 = vpop.f32.mrf.mxu0
  %2022 = vmatprep.mubr.f32.mxu0 0.0
  %2023 = vmatmul.mubr.f32.gmra.mxu0 %v43
  %v2024 = vpop.f32.mrf.mxu0
  %v2025 = vadd.f32 %v23, %v2024
  %v2026 = vpop.f32.mrf.mxu0
  %2027 = vmatprep.mubr.f32.mxu0 0.0
  %2028 = vmatmul.mubr.f32.gmra.mxu0 %v46
  %v2029 = vpop.f32.mrf.mxu0
  %v2030 = vadd.f32 %v24, %v2029
  %v2031 = vpop.f32.mrf.mxu0
  %2032 = vmatprep.mubr.f32.mxu0 0.0
  %2033 = vmatmul.mubr.f32.gmra.mxu0 %v49
  %v2034 = vpop.f32.mrf.mxu0
  %v2035 = vadd.f32 %v25, %v2034
  %v2036 = vpop.f32.mrf.mxu0
  %2037 = vmatprep.mubr.f32.mxu0 0.0
  %2038 = vmatmul.mubr.f32.gmra.mxu0 %v52
  %v2039 = vpop.f32.mrf.mxu0
  %v2040 = vadd.f32 %v26, %v2039
  %v2041 = vpop.f32.mrf.mxu0
  %2042 = vmatprep.mubr.f32.mxu0 0.0
  %2043 = vmatmul.mubr.f32.gmra.mxu0 %v55
  %v2044 = vpop.f32.mrf.mxu0
  %v2045 = vadd.f32 %v27, %v2044
  %v2046 = vpop.f32.mrf.mxu0
  %2047 = vmatprep.mubr.f32.mxu0 0.0
  %2048 = vmatmul.mubr.f32.gmra.mxu0 %v58
  %v2049 = vpop.f32.mrf.mxu0
  %v2050 = vadd.f32 %v28, %v2049
  %v2051 = vpop.f32.mrf.mxu0
  %2052 = vmatprep.mubr.f32.mxu0 0.0
  %2053 = vmatmul.mubr.f32.gmra.mxu0 %v61
  %v2054 = vpop.f32.mrf.mxu0
  %v2055 = vadd.f32 %v29, %v2054
  %v2056 = vpop.f32.mrf.mxu0
  %2057 = vdwg.mxu0
  %2058 = vmatprep.subr.mxu0 0.0
  %2059 = vmatpush1.msra.mxu0 0.0
  %2060 = vmatprep.subr.mxu0 0.0
  %2061 = vmatpush1.msra.mxu0 0.0
  %2062 = vmatprep.subr.mxu0 0.0
  %2063 = vmatpush1.msra.mxu0 0.0
  %2064 = vmatprep.subr.mxu0 0.0
  %2065 = vmatpush1.msra.mxu0 0.0
  %2066 = vmatprep.subr.mxu0 0.0
  %2067 = vmatpush1.msra.mxu0 0.0
  %2068 = vmatprep.subr.mxu0 0.0
  %2069 = vmatpush1.msra.mxu0 0.0
  %2070 = vmatprep.subr.mxu0 0.0
  %2071 = vmatpush1.msra.mxu0 0.0
  %2072 = vmatprep.subr.mxu0 0.0
  %2073 = vmatpush1.msra.mxu0 0.0
  %2074 = vmatprep.subr.mxu0 0.0
  %2075 = vmatpush1.msra.mxu0 %v2055
  %2076 = vmatprep.subr.mxu0 0.0
  %2077 = vmatpush1.msra.mxu0 %v2050
  %2078 = vmatprep.subr.mxu0 0.0
  %2079 = vmatpush1.msra.mxu0 %v2045
  %2080 = vmatprep.subr.mxu0 0.0
  %2081 = vmatpush1.msra.mxu0 %v2040
  %2082 = vmatprep.subr.mxu0 0.0
  %2083 = vmatpush1.msra.mxu0 %v2035
  %2084 = vmatprep.subr.mxu0 0.0
  %2085 = vmatpush1.msra.mxu0 %v2030
  %2086 = vmatprep.subr.mxu0 0.0
  %2087 = vmatpush1.msra.mxu0 %v2025
  %2088 = vmatprep.subr.mxu0 0.0
  %2089 = vmatpush1.msra.mxu0 %v2020
  %2090 = vmatprep.subr.mxu0 0.0
  %2091 = vmatpush2.msra.mxu0 0.0
  %2092 = vmatprep.subr.mxu0 0.0
  %2093 = vmatpush2.msra.mxu0 0.0
  %2094 = vmatprep.subr.mxu0 0.0
  %2095 = vmatpush2.msra.mxu0 0.0
  %2096 = vmatprep.subr.mxu0 0.0
  %2097 = vmatpush2.msra.mxu0 0.0
  %2098 = vmatprep.subr.mxu0 0.0
  %2099 = vmatpush2.msra.mxu0 0.0
  %2100 = vmatprep.subr.mxu0 0.0
  %2101 = vmatpush2.msra.mxu0 0.0
  %2102 = vmatprep.subr.mxu0 0.0
  %2103 = vmatpush2.msra.mxu0 0.0
  %2104 = vmatprep.subr.mxu0 0.0
  %2105 = vmatpush2.msra.mxu0 0.0
  %2106 = vmatprep.subr.mxu0 0.0
  %2107 = vmatpush2.msra.mxu0 0.0
  %2108 = vmatprep.subr.mxu0 0.0
  %2109 = vmatpush2.msra.mxu0 0.0
  %2110 = vmatprep.subr.mxu0 0.0
  %2111 = vmatpush2.msra.mxu0 0.0
  %2112 = vmatprep.subr.mxu0 0.0
  %2113 = vmatpush2.msra.mxu0 0.0
  %2114 = vmatprep.subr.mxu0 0.0
  %2115 = vmatpush2.msra.mxu0 0.0
  %2116 = vmatprep.subr.mxu0 0.0
  %2117 = vmatpush2.msra.mxu0 0.0
  %2118 = vmatprep.subr.mxu0 0.0
  %2119 = vmatpush2.msra.mxu0 0.0
  %2120 = vmatprep.subr.mxu0 0.0
  %2121 = vmatpush2.msra.mxu0 0.0
  %2122 = vmatprep.mubr.f32.mxu0 0.0
  %2123 = vmatmul.mubr.f32.gmra.mxu0 %v40
  %v2124 = vpop.f32.mrf.mxu0
  %v2125 = vadd.f32 %v22, %v2124
  %v2126 = vpop.f32.mrf.mxu0
  %2127 = vmatprep.mubr.f32.mxu0 0.0
  %2128 = vmatmul.mubr.f32.gmra.mxu0 %v43
  %v2129 = vpop.f32.mrf.mxu0
  %v2130 = vadd.f32 %v23, %v2129
  %v2131 = vpop.f32.mrf.mxu0
  %2132 = vmatprep.mubr.f32.mxu0 0.0
  %2133 = vmatmul.mubr.f32.gmra.mxu0 %v46
  %v2134 = vpop.f32.mrf.mxu0
  %v2135 = vadd.f32 %v24, %v2134
  %v2136 = vpop.f32.mrf.mxu0
  %2137 = vmatprep.mubr.f32.mxu0 0.0
  %2138 = vmatmul.mubr.f32.gmra.mxu0 %v49
  %v2139 = vpop.f32.mrf.mxu0
  %v2140 = vadd.f32 %v25, %v2139
  %v2141 = vpop.f32.mrf.mxu0
  %2142 = vmatprep.mubr.f32.mxu0 0.0
  %2143 = vmatmul.mubr.f32.gmra.mxu0 %v52
  %v2144 = vpop.f32.mrf.mxu0
  %v2145 = vadd.f32 %v26, %v2144
  %v2146 = vpop.f32.mrf.mxu0
  %2147 = vmatprep.mubr.f32.mxu0 0.0
  %2148 = vmatmul.mubr.f32.gmra.mxu0 %v55
  %v2149 = vpop.f32.mrf.mxu0
  %v2150 = vadd.f32 %v27, %v2149
  %v2151 = vpop.f32.mrf.mxu0
  %2152 = vmatprep.mubr.f32.mxu0 0.0
  %2153 = vmatmul.mubr.f32.gmra.mxu0 %v58
  %v2154 = vpop.f32.mrf.mxu0
  %v2155 = vadd.f32 %v28, %v2154
  %v2156 = vpop.f32.mrf.mxu0
  %2157 = vmatprep.mubr.f32.mxu0 0.0
  %2158 = vmatmul.mubr.f32.gmra.mxu0 %v61
  %v2159 = vpop.f32.mrf.mxu0
  %v2160 = vadd.f32 %v29, %v2159
  %v2161 = vpop.f32.mrf.mxu0
  %2162 = vdwg.mxu0
  %vm2163 = vcmask 261120
  %2164 = vst.msk [vmem:[%s3] sm:$0xff] %vm2163, %v2125
  %2165 = vst.msk [vmem:[%s3 + $0x8] sm:$0xff] %vm2163, %v2130
  %2166 = vst.msk [vmem:[%s3 + $0x10] sm:$0xff] %vm2163, %v2135
  %2167 = vst.msk [vmem:[%s3 + $0x18] sm:$0xff] %vm2163, %v2140
  %2168 = vst.msk [vmem:[%s3 + $0x20] sm:$0xff] %vm2163, %v2145
  %2169 = vst.msk [vmem:[%s3 + $0x28] sm:$0xff] %vm2163, %v2150
  %2170 = vst.msk [vmem:[%s3 + $0x30] sm:$0xff] %vm2163, %v2155
  %2171 = vst.msk [vmem:[%s3 + $0x38] sm:$0xff] %vm2163, %v2160
  // Predicated region
  $region14: #{tpu_custom_call.1} parent=0 // pred_check
    _
  $region15: #{tpu_custom_call.1} parent=0 // pred_check_branch
    %2173 = sbr.rel (0) target = $region17
  $region16: #{tpu_custom_call.1} parent=0 // pred_region
    _
  $region17: #{tpu_custom_call.1} parent=0 // pred_fallthru
    _
  // Predicated region
  $region18: #{tpu_custom_call.1} parent=0 // pred_check
    _
  $region19: #{tpu_custom_call.1} parent=0 // pred_check_branch
    %2175 = sbr.rel (0) target = $region21
  $region20: #{tpu_custom_call.1} parent=0 // pred_region
    _
  $region21: #{tpu_custom_call.1} parent=0 // pred_fallthru
    _

</llo_original>
